<compile_context>
chip_gen: v7x
topology: tpu7x:2x2x1
jax: 0.10.0
libtpu: 0.0.40
codegen_flags: <defaults>
</compile_context>

<pallas_src>
import functools

import jax
import jax.numpy as jnp
from jax.experimental import pallas as pl
from jax.experimental.pallas import tpu as pltpu

LEAKY_SLOPE = 0.01              # nn.LeakyReLU default
HIDDEN = 2048                   # hard-coded in the PyTorch module
LANE = 128
VMEM_BUDGET = 40 * 1024 * 1024  # target resident working set (all generations)
VMEM_LIMIT = 48 * 1024 * 1024   # requested scoped VMEM (< v7x 64 MiB physical)


def _leaky_relu(x):
    return jnp.where(x >= 0, x, LEAKY_SLOPE * x)


def _round_up(n, m):
    return ((n + m - 1) // m) * m


def _pick_bb(B, need_fn, *, max_bb=8):
    """Largest divisor Bb of B whose VMEM estimate fits the budget.

    Capped at B//2 so the batch grid axis keeps extent >= 2 whenever B >= 2:
    on v7x this keeps both TensorCores busy; on v5e/v6e (single TC) it costs
    at most one extra weight streaming pass.
    """
    cap = min(max_bb, max(1, B // 2))
    bb = 1
    for d in range(1, cap + 1):
        if B % d == 0 and need_fn(d) <= VMEM_BUDGET:
            bb = d
    return bb


# ---------------------------------------------------------------------------
# Kernel A: conv1 for small len_feature — 3 taps pre-stacked along channels,
# Bb batch elements folded into the matmul M dim.
# ---------------------------------------------------------------------------
def _conv1_small_kernel(Tp, T, x_ref, w_ref, b_ref, o_ref):
    # x_ref: (Bb, Tp, 3*Cin) bf16   w_ref: (3*Cin, H) bf16
    # b_ref: (1, H) f32             o_ref: (Bb, Tp, H) bf16
    Bb, _, K3 = x_ref.shape
    M = Bb * Tp
    x = x_ref[...].reshape(M, K3)
    acc = jnp.dot(x, w_ref[...], preferred_element_type=jnp.float32)
    h = _leaky_relu(acc + b_ref[...])
    if Tp != T:
        # Zero time-padded rows so conv2's k=3 taps see true zero padding.
        t_idx = jax.lax.broadcasted_iota(jnp.int32, h.shape, 0) % Tp
        h = jnp.where(t_idx < T, h, 0.0)
    o_ref[...] = h.astype(o_ref.dtype).reshape(o_ref.shape)


def conv1_small(x_pad, w1_flat, b1, *, T):
    B, Tp, Cin = x_pad.shape
    K3 = 3 * Cin
    H = w1_flat.shape[1]

    # Stack the 3 taps along channels in the wrapper (Cin is small here).
    zeros = jnp.zeros_like(x_pad[:, :1])
    x_prev = jnp.concatenate([zeros, x_pad[:, :-1]], axis=1)   # x[t-1]
    x_next = jnp.concatenate([x_pad[:, 1:], zeros], axis=1)    # x[t+1]
    xs = jnp.concatenate([x_prev, x_pad, x_next], axis=-1)     # (B, Tp, 3*Cin)

    def need(Bb):
        return (2 * Bb * Tp * K3 * 2          # stacked-x block (double buffered)
                + 2 * Bb * Tp * H * 2         # output block
                + Bb * Tp * H * 4             # f32 pre-activation temporary
                + 2 * K3 * H * 2 + 2 * H * 4  # weight + bias blocks
                + (2 << 20))                  # margin
    Bb = _pick_bb(B, need)

    kern = functools.partial(_conv1_small_kernel, Tp, T)
    cost = pl.CostEstimate(
        flops=2 * B * Tp * K3 * H, transcendentals=0,
        bytes_accessed=int(xs.size * 2 + w1_flat.size * 2 + b1.size * 4
                           + B * Tp * H * 2))
    return pl.pallas_call(
        kern,
        out_shape=jax.ShapeDtypeStruct((B, Tp, H), jnp.bfloat16),
        grid_spec=pltpu.PrefetchScalarGridSpec(
            num_scalar_prefetch=0,
            grid=(B // Bb,),
            in_specs=[
                pl.BlockSpec((Bb, Tp, K3), lambda b: (b, 0, 0)),
                pl.BlockSpec((K3, H), lambda b: (0, 0)),
                pl.BlockSpec((1, H), lambda b: (0, 0)),
            ],
            out_specs=pl.BlockSpec((Bb, Tp, H), lambda b: (b, 0, 0)),
        ),
        compiler_params=pltpu.CompilerParams(
            dimension_semantics=("parallel",),
            vmem_limit_bytes=VMEM_LIMIT),
        cost_estimate=cost,
    )(xs, w1_flat, b1)


# ---------------------------------------------------------------------------
# Kernel B: x-resident Conv1d(k=3, pad=1) + bias + LeakyReLU,
# optionally fused with a bias-free 1x1 conv accumulated across hidden tiles.
# Grid (batch blocks, hidden tiles); Cin chunks are a static in-kernel loop
# over the resident activation block (x fetched from HBM once per batch block).
# ---------------------------------------------------------------------------
def _conv3x3_resident_kernel(Tp, T, tk, nk, fuse_1x1, zero_tail, *refs):
    if fuse_1x1:
        x_ref, w_ref, b_ref, w3_ref, o_ref = refs
    else:
        x_ref, w_ref, b_ref, o_ref = refs

    Bb = x_ref.shape[0]
    M = Bb * Tp
    tn = w_ref.shape[2]
    f32 = jnp.float32

    if fuse_1x1:
        # Output block is resident across the (arbitrary) hidden-tile axis and
        # accumulates the fused 1x1 conv; zero it on the first hidden tile.
        @pl.when(pl.program_id(1) == 0)
        def _():
            o_ref[...] = jnp.zeros_like(o_ref)

    accp = jnp.zeros((M, tn), f32)   # tap 0 : pairs with x[t-1]
    accc = jnp.zeros((M, tn), f32)   # tap 1 : pairs with x[t]
    accn = jnp.zeros((M, tn), f32)   # tap 2 : pairs with x[t+1]
    # Static unroll over Cin chunks: all slice offsets are compile-time
    # constants and the three tap dots run back-to-back into the accumulators.
    for kk in range(nk):
        lo = kk * tk
        xk = x_ref[:, :, lo:lo + tk].reshape(M, tk)
        accp = accp + jnp.dot(xk, w_ref[0, lo:lo + tk, :],
                              preferred_element_type=f32)
        accc = accc + jnp.dot(xk, w_ref[1, lo:lo + tk, :],
                              preferred_element_type=f32)
        accn = accn + jnp.dot(xk, w_ref[2, lo:lo + tk, :],
                              preferred_element_type=f32)

    # Temporal shift applied once, in the epilogue (XLU roll + row masks):
    #   out[t] = x[t-1] @ W0 + x[t] @ W1 + x[t+1] @ W2
    # The (row % Tp) masks stop taps from bleeding across batch boundaries.
    t_idx = jax.lax.broadcasted_iota(jnp.int32, (M, tn), 0) % Tp
    yp = jnp.where(t_idx >= 1, pltpu.roll(accp, 1, 0), 0.0)
    yn = jnp.where(t_idx < Tp - 1, pltpu.roll(accn, M - 1, 0), 0.0)
    h = _leaky_relu(yp + accc + yn + b_ref[...])
    if zero_tail:
        # Zero time-padded rows so the next k=3 conv sees true zero padding.
        h = jnp.where(t_idx < T, h, 0.0)

    if fuse_1x1:
        o = o_ref[...].reshape(M, o_ref.shape[2])
        o = o + jnp.dot(h.astype(jnp.bfloat16), w3_ref[...],
                        preferred_element_type=f32)
        o_ref[...] = o.reshape(o_ref.shape)
    else:
        o_ref[...] = h.astype(o_ref.dtype).reshape(o_ref.shape)


def _conv3x3_resident_call(x_pad, w_t, bias, w3_pad, *, T, zero_tail, tn, tk, Bb):
    B, Tp, Cin = x_pad.shape
    H = w_t.shape[2]
    pad_c = (-Cin) % tk
    if pad_c:
        x_pad = jnp.pad(x_pad, ((0, 0), (0, 0), (0, pad_c)))
        w_t = jnp.pad(w_t, ((0, 0), (0, pad_c), (0, 0)))
    Cin_p = Cin + pad_c
    nk = Cin_p // tk
    fuse = w3_pad is not None

    kern = functools.partial(_conv3x3_resident_kernel, Tp, T, tk, nk, fuse,
                             zero_tail)

    in_specs = [
        pl.BlockSpec((Bb, Tp, Cin_p), lambda b, j: (b, 0, 0)),   # x resident
        pl.BlockSpec((3, Cin_p, tn), lambda b, j: (0, 0, j)),
        pl.BlockSpec((1, tn), lambda b, j: (0, j)),
    ]
    inputs = [x_pad, w_t, bias]
    flops = 2 * B * Tp * 3 * Cin_p * H
    bytes_acc = int(x_pad.size * 2 + w_t.size * 2 * (B // Bb) + bias.size * 4)
    if fuse:
        cout_p = w3_pad.shape[1]
        in_specs.append(pl.BlockSpec((tn, cout_p), lambda b, j: (j, 0)))
        inputs.append(w3_pad)
        out_shape = jax.ShapeDtypeStruct((B, Tp, cout_p), jnp.float32)
        out_spec = pl.BlockSpec((Bb, Tp, cout_p), lambda b, j: (b, 0, 0))
        semantics = ("parallel", "arbitrary")
        flops += 2 * B * Tp * H * cout_p
        bytes_acc += int(w3_pad.size * 2 * (B // Bb) + B * Tp * cout_p * 4)
    else:
        out_shape = jax.ShapeDtypeStruct((B, Tp, H), jnp.bfloat16)
        out_spec = pl.BlockSpec((Bb, Tp, tn), lambda b, j: (b, 0, j))
        semantics = ("parallel", "parallel")
        bytes_acc += int(B * Tp * H * 2)

    cost = pl.CostEstimate(flops=flops, transcendentals=0,
                           bytes_accessed=bytes_acc)
    return pl.pallas_call(
        kern,
        out_shape=out_shape,
        grid_spec=pltpu.PrefetchScalarGridSpec(
            num_scalar_prefetch=0,
            grid=(B // Bb, H // tn),
            in_specs=in_specs,
            out_specs=out_spec,
        ),
        compiler_params=pltpu.CompilerParams(
            dimension_semantics=semantics,
            vmem_limit_bytes=VMEM_LIMIT),
        cost_estimate=cost,
    )(*inputs)


# ---------------------------------------------------------------------------
# Kernel C: streamed Conv1d(k=3, pad=1) + bias + LeakyReLU fallback.
# Grid (batch blocks, hidden tiles, Cin tiles); used when the resident plan
# does not fit the VMEM budget (very large Cin or very long T).
# ---------------------------------------------------------------------------
def _conv3x3_streamed_kernel(Tp, T, zero_tail,
                             x_ref, w_ref, b_ref, o_ref,
                             accp_ref, accc_ref, accn_ref):
    k = pl.program_id(2)
    nk = pl.num_programs(2)
    Bb, _, tk = x_ref.shape
    M = Bb * Tp

    @pl.when(k == 0)
    def _():
        accp_ref[...] = jnp.zeros_like(accp_ref)
        accc_ref[...] = jnp.zeros_like(accc_ref)
        accn_ref[...] = jnp.zeros_like(accn_ref)

    x = x_ref[...].reshape(M, tk)
    accp_ref[...] += jnp.dot(x, w_ref[0], preferred_element_type=jnp.float32)
    accc_ref[...] += jnp.dot(x, w_ref[1], preferred_element_type=jnp.float32)
    accn_ref[...] += jnp.dot(x, w_ref[2], preferred_element_type=jnp.float32)

    @pl.when(k == nk - 1)
    def _():
        tn = accc_ref.shape[1]
        t_idx = jax.lax.broadcasted_iota(jnp.int32, (M, tn), 0) % Tp
        yp = jnp.where(t_idx >= 1, pltpu.roll(accp_ref[...], 1, 0), 0.0)
        yn = jnp.where(t_idx < Tp - 1, pltpu.roll(accn_ref[...], M - 1, 0), 0.0)
        h = _leaky_relu(yp + accc_ref[...] + yn + b_ref[...])
        if zero_tail:
            h = jnp.where(t_idx < T, h, 0.0)
        o_ref[...] = h.astype(o_ref.dtype).reshape(o_ref.shape)


def _conv3x3_streamed_call(x_pad, w_t, bias, *, T, zero_tail):
    B, Tp, Cin = x_pad.shape
    H = w_t.shape[2]
    tn = next(t for t in (512, 256, 128) if H % t == 0)
    tk = tn
    pad_c = (-Cin) % tk
    if pad_c:
        x_pad = jnp.pad(x_pad, ((0, 0), (0, 0), (0, pad_c)))
        w_t = jnp.pad(w_t, ((0, 0), (0, pad_c), (0, 0)))
    Cin_p = Cin + pad_c

    def need(Bb):
        return (2 * Bb * Tp * tk * 2 + 2 * Bb * Tp * tn * 2
                + 3 * Bb * Tp * tn * 4
                + 2 * 3 * tk * tn * 2 + 2 * tn * 4 + (2 << 20))
    Bb = _pick_bb(B, need)

    kern = functools.partial(_conv3x3_streamed_kernel, Tp, T, zero_tail)
    cost = pl.CostEstimate(
        flops=2 * B * Tp * 3 * Cin_p * H, transcendentals=0,
        bytes_accessed=int(x_pad.size * 2 * (H // tn)
                           + w_t.size * 2 * (B // Bb) + B * Tp * H * 2))
    return pl.pallas_call(
        kern,
        out_shape=jax.ShapeDtypeStruct((B, Tp, H), jnp.bfloat16),
        grid_spec=pltpu.PrefetchScalarGridSpec(
            num_scalar_prefetch=0,
            grid=(B // Bb, H // tn, Cin_p // tk),
            in_specs=[
                pl.BlockSpec((Bb, Tp, tk), lambda b, j, k: (b, 0, k)),
                pl.BlockSpec((3, tk, tn), lambda b, j, k: (0, k, j)),
                pl.BlockSpec((1, tn), lambda b, j, k: (0, j)),
            ],
            out_specs=pl.BlockSpec((Bb, Tp, tn), lambda b, j, k: (b, 0, j)),
            scratch_shapes=[pltpu.VMEM((Bb * Tp, tn), jnp.float32)] * 3,
        ),
        compiler_params=pltpu.CompilerParams(
            dimension_semantics=("parallel", "parallel", "arbitrary"),
            vmem_limit_bytes=VMEM_LIMIT),
        cost_estimate=cost,
    )(x_pad, w_t, bias)


# ---------------------------------------------------------------------------
# Kernel D: standalone 1x1 conv (conv3, no bias) — only used together with the
# streamed fallback; the resident conv2 kernel fuses it instead.
# ---------------------------------------------------------------------------
def _conv1x1_kernel(Tp, x_ref, w_ref, o_ref):
    Bb, _, H = x_ref.shape
    M = Bb * Tp
    x = x_ref[...].reshape(M, H)
    o = jnp.dot(x, w_ref[...], preferred_element_type=jnp.float32)
    o_ref[...] = o.reshape(o_ref.shape)


def conv1x1(h_pad, w3_pad):
    B, Tp, H = h_pad.shape
    cout_p = w3_pad.shape[1]

    def need(Bb):
        return (2 * Bb * Tp * H * 2 + 2 * Bb * Tp * cout_p * 4
                + 2 * H * cout_p * 2 + (2 << 20))
    Bb = _pick_bb(B, need)

    kern = functools.partial(_conv1x1_kernel, Tp)
    cost = pl.CostEstimate(
        flops=2 * B * Tp * H * cout_p, transcendentals=0,
        bytes_accessed=int(h_pad.size * 2 + w3_pad.size * 2
                           + B * Tp * cout_p * 4))
    return pl.pallas_call(
        kern,
        out_shape=jax.ShapeDtypeStruct((B, Tp, cout_p), jnp.float32),
        grid_spec=pltpu.PrefetchScalarGridSpec(
            num_scalar_prefetch=0,
            grid=(B // Bb,),
            in_specs=[
                pl.BlockSpec((Bb, Tp, H), lambda b: (b, 0, 0)),
                pl.BlockSpec((H, cout_p), lambda b: (0, 0)),
            ],
            out_specs=pl.BlockSpec((Bb, Tp, cout_p), lambda b: (b, 0, 0)),
        ),
        compiler_params=pltpu.CompilerParams(
            dimension_semantics=("parallel",),
            vmem_limit_bytes=VMEM_LIMIT),
        cost_estimate=cost,
    )(h_pad, w3_pad)


# ---------------------------------------------------------------------------
# Dispatcher for the k=3 conv layers: resident plan if it fits, else streamed.
# ---------------------------------------------------------------------------
def conv3x3_lrelu(x_pad, w_t, bias, *, T, w3_pad=None, zero_tail=False,
                  force_streamed=False):
    B, Tp, Cin = x_pad.shape
    H = w_t.shape[2]
    cout_p = 0 if w3_pad is None else w3_pad.shape[1]

    if not force_streamed:
        for tn in (512, 256, 128):
            if H % tn:
                continue
            tk = tn
            Cin_p = _round_up(Cin, tk)

            def need(Bb, tn=tn, tk=tk, Cin_p=Cin_p):
                x_blk = 2 * Bb * Tp * Cin_p * 2          # resident x, dbl-buffered
                w_blk = 2 * 3 * Cin_p * tn * 2
                acc = 3 * Bb * Tp * tn * 4               # per-tap accumulators
                if cout_p:
                    o_blk = 2 * Bb * Tp * cout_p * 4 + 2 * tn * cout_p * 2
                else:
                    o_blk = 2 * Bb * Tp * tn * 2
                return x_blk + w_blk + acc + o_blk + (2 << 20)

            if need(1) > VMEM_BUDGET:
                continue
            Bb = _pick_bb(B, need)
            return _conv3x3_resident_call(x_pad, w_t, bias, w3_pad, T=T,
                                          zero_tail=zero_tail, tn=tn, tk=tk,
                                          Bb=Bb)

    # Streamed fallback: x re-fetched per hidden tile, weight tiled over Cin.
    # TODO(synk): tile the T axis (with a +/-1 halo) once even this path's
    #             (Bb*Tp, tn) accumulators overflow VMEM.
    h = _conv3x3_streamed_call(x_pad, w_t, bias, T=T, zero_tail=zero_tail)
    if w3_pad is None:
        return h
    return conv1x1(h, w3_pad)


# ---------------------------------------------------------------------------
# Full module forward.
# ---------------------------------------------------------------------------
def cas_module_forward(x, kp, *, num_classes, force_streamed=False):
    B, T, _ = x.shape
    Tp = _round_up(max(T, 8), 8)          # layout-free (Bb, Tp, C)->(Bb*Tp, C)
    xb = x.astype(jnp.bfloat16)
    if Tp != T:
        xb = jnp.pad(xb, ((0, 0), (0, Tp - T), (0, 0)))

    if kp["w1_flat"] is not None:         # small len_feature: folded taps
        h1 = conv1_small(xb, kp["w1_flat"], kp["b1"], T=T)
    else:                                 # large len_feature: tiled conv
        h1 = conv3x3_lrelu(xb, kp["w1_t"], kp["b1"], T=T,
                           zero_tail=(Tp != T), force_streamed=force_streamed)

    # Dropout(p=0.7): identity in eval / inference mode.
    # TODO(synk): training-mode Dropout (pltpu.prng_seed + prng_random_bits).
    out_pad = conv3x3_lrelu(h1, kp["w2_t"], kp["b2"], T=T,
                            w3_pad=kp["w3_pad"], zero_tail=False,
                            force_streamed=force_streamed)
    return out_pad[:, :T, :num_classes + 1]      # drop time + lane padding


# ---------------------------------------------------------------------------
# Parameters (PyTorch layouts) + kernel-ready (transposed / bf16 / padded).
# ---------------------------------------------------------------------------
def init_params(key, len_feature, num_classes, hidden=HIDDEN):
    k1, k2, k3, k4, k5 = jax.random.split(key, 5)
    scale = 0.02
    # PyTorch conv weight layout: (out_channels, in_channels, kernel_size)
    return {
        "w1": scale * jax.random.normal(k1, (hidden, len_feature, 3), jnp.float32),
        "b1": scale * jax.random.normal(k2, (hidden,), jnp.float32),
        "w2": scale * jax.random.normal(k3, (hidden, hidden, 3), jnp.float32),
        "b2": scale * jax.random.normal(k4, (hidden,), jnp.float32),
        "w3": scale * jax.random.normal(k5, (num_classes + 1, hidden, 1), jnp.float32),
    }


def prepare_kernel_params(p, *, small_cin_threshold=256):
    hidden = p["w1"].shape[0]
    len_feature = p["w1"].shape[1]
    cout = p["w3"].shape[0]
    # TODO(synk): optional fp8 quantization of w1_t/w2_t for the v7x MXU.
    w1_t = jnp.transpose(p["w1"], (2, 1, 0)).astype(jnp.bfloat16)   # (3, Cin, H)
    kp = {
        "b1": p["b1"].reshape(1, hidden),                            # f32
        "w2_t": jnp.transpose(p["w2"], (2, 1, 0)).astype(jnp.bfloat16),
        "b2": p["b2"].reshape(1, hidden),                            # f32
    }
    if len_feature <= small_cin_threshold:
        kp["w1_flat"] = w1_t.reshape(3 * len_feature, hidden)
        kp["w1_t"] = None
    else:
        kp["w1_flat"] = None
        kp["w1_t"] = w1_t
    # 1x1 conv weight -> (H, Cout), lane-padded to a multiple of 128.
    w3_m = jnp.transpose(p["w3"][:, :, 0], (1, 0)).astype(jnp.bfloat16)
    cout_pad = _round_up(cout, LANE)
    kp["w3_pad"] = jnp.pad(w3_m, ((0, 0), (0, cout_pad - cout)))
    return kp


# ---------------------------------------------------------------------------
# Plain-JAX reference mirroring the kernels' bf16-matmul / f32-accum numerics.
# ---------------------------------------------------------------------------
def _conv1d_ref(x_btc, w_ock, b_o):
    B, T, _ = x_btc.shape
    K = w_ock.shape[2]
    pad = (K - 1) // 2
    xp = jnp.pad(x_btc, ((0, 0), (pad, pad), (0, 0)))
    out = jnp.zeros((B, T, w_ock.shape[0]), jnp.float32)
    for k in range(K):
        out = out + jnp.einsum("btc,oc->bto", xp[:, k:k + T], w_ock[:, :, k],
                               preferred_element_type=jnp.float32)
    if b_o is not None:
        out = out + b_o
    return out


def cas_module_reference(x, p):
    xb = x.astype(jnp.bfloat16)
    h = _conv1d_ref(xb, p["w1"].astype(jnp.bfloat16), p["b1"])
    h = _leaky_relu(h).astype(jnp.bfloat16)
    h = _conv1d_ref(h, p["w2"].astype(jnp.bfloat16), p["b2"])
    h = _leaky_relu(h).astype(jnp.bfloat16)
    out = _conv1d_ref(h, p["w3"].astype(jnp.bfloat16), None)
    return out


if __name__ == "__main__":
    # (B, T, len_feature, num_classes, force_streamed):
    #   1: small-Cin conv1 path, T already a multiple of 8
    #   2: small-Cin path + time padding (T=13 -> Tp=16)
    #   3: tiled conv1 path with Bb=2 batch fold + time padding
    #   4: canonical feature width (resident conv kernels)
    #   5: same shapes through the streamed fallback + standalone 1x1 kernel
    configs = [
        (2, 8, 32, 4, False),
        (2, 13, 32, 7, False),
        (4, 13, 320, 6, False),
        (2, 8, 2048, 20, False),
        (2, 8, 2048, 20, True),
    ]
    key = jax.random.PRNGKey(0)
    for (B, T, len_feature, num_classes, force_streamed) in configs:
        key, kx, kw = jax.random.split(key, 3)
        x = jax.random.normal(kx, (B, T, len_feature), jnp.float32)
        params = init_params(kw, len_feature, num_classes)
        kparams = prepare_kernel_params(params)

        out = cas_module_forward(x, kparams, num_classes=num_classes,
                                 force_streamed=force_streamed)
        out = jax.block_until_ready(out)
        assert out.shape == (B, T, num_classes + 1), out.shape

        ref = cas_module_reference(x, params)
        err = float(jnp.max(jnp.abs(out - ref)))
        assert err < 3e-3, (err, (B, T, len_feature, num_classes, force_streamed))

    print("KERNEL_OK")
</pallas_src>

<mosaic_0001>
module attributes {stable_mosaic.version = 11 : i64} {
  func.func @_conv1_small_kernel(%arg0: i32, %arg1: memref<1x8x96xbf16, #tpu.memory_space<vmem>>, %arg2: memref<96x2048xbf16, #tpu.memory_space<vmem>>, %arg3: memref<1x2048xf32, #tpu.memory_space<vmem>>, %arg4: memref<1x8x2048xbf16, #tpu.memory_space<vmem>>) attributes {dimension_semantics = [#tpu.dimension_semantics<parallel>], iteration_bounds = array<i64: 2>, scalar_prefetch = 0 : i64, scratch_operands = 0 : i64, tpu.core_type = #tpu.core_type<tc>, window_params = [{transform_indices = @transform_0, window_bounds = array<i64: 1, 8, 96>}, {pipeline_mode = #tpu.pipeline_mode<synchronous>, transform_indices = @transform_1, window_bounds = array<i64: 96, 2048>}, {pipeline_mode = #tpu.pipeline_mode<synchronous>, transform_indices = @transform_2, window_bounds = array<i64: 1, 2048>}, {transform_indices = @transform_3, window_bounds = array<i64: 1, 8, 2048>}]} {
    %c0 = arith.constant 0 : index
    %c0_0 = arith.constant 0 : index
    %c0_1 = arith.constant 0 : index
    %0 = vector.load %arg1[%c0, %c0_0, %c0_1] : memref<1x8x96xbf16, #tpu.memory_space<vmem>>, vector<1x8x96xbf16>
    %1 = vector.shape_cast %0 : vector<1x8x96xbf16> to vector<8x96xbf16>
    %c0_2 = arith.constant 0 : index
    %c0_3 = arith.constant 0 : index
    %2 = vector.load %arg2[%c0_2, %c0_3] : memref<96x2048xbf16, #tpu.memory_space<vmem>>, vector<96x2048xbf16>
    %cst = arith.constant dense<0.000000e+00> : vector<8x2048xf32>
    %3 = tpu.matmul %1, %2, %cst {dimension_numbers = #tpu.dot_dimension_numbers<[1], [0], [0], [1], [0, 0, 1, 1], [], []>} : vector<8x96xbf16>, vector<96x2048xbf16>, vector<8x2048xf32> -> vector<8x2048xf32>
    %c0_4 = arith.constant 0 : index
    %c0_5 = arith.constant 0 : index
    %4 = vector.load %arg3[%c0_4, %c0_5] : memref<1x2048xf32, #tpu.memory_space<vmem>>, vector<1x2048xf32>
    %5 = vector.broadcast %4 : vector<1x2048xf32> to vector<8x2048xf32>
    %6 = arith.addf %3, %5 : vector<8x2048xf32>
    %cst_6 = arith.constant 0.000000e+00 : f32
    %7 = vector.broadcast %cst_6 : f32 to vector<8x2048xf32>
    %8 = arith.cmpf oge, %6, %7 : vector<8x2048xf32>
    %cst_7 = arith.constant 0.00999999977 : f32
    %9 = vector.broadcast %cst_7 : f32 to vector<8x2048xf32>
    %10 = arith.mulf %9, %6 : vector<8x2048xf32>
    %11 = arith.select %8, %6, %10 : vector<8x2048xi1>, vector<8x2048xf32>
    %12 = arith.truncf %11 : vector<8x2048xf32> to vector<8x2048xbf16>
    %13 = vector.shape_cast %12 : vector<8x2048xbf16> to vector<1x8x2048xbf16>
    %c0_8 = arith.constant 0 : index
    %c0_9 = arith.constant 0 : index
    %c0_10 = arith.constant 0 : index
    %14 = vector.load %arg4[%c0_8, %c0_9, %c0_10] : memref<1x8x2048xbf16, #tpu.memory_space<vmem>>, vector<1x8x2048xbf16>
    tpu.vector_store %arg4[%c0_8, %c0_9, %c0_10], %13 {strides = array<i32>} : memref<1x8x2048xbf16, #tpu.memory_space<vmem>>, vector<1x8x2048xbf16>,
    return
  }
  func.func @transform_0(%arg0: i32) -> (i32, i32, i32) {
    %c0_i32 = arith.constant 0 : i32
    %c0_i32_0 = arith.constant 0 : i32
    %c0_i32_1 = arith.constant 0 : i32
    return %arg0, %c0_i32, %c0_i32_0 : i32, i32, i32
  }
  func.func @transform_1(%arg0: i32) -> (i32, i32) {
    %c0_i32 = arith.constant 0 : i32
    %c0_i32_0 = arith.constant 0 : i32
    %c0_i32_1 = arith.constant 0 : i32
    return %c0_i32, %c0_i32_0 : i32, i32
  }
  func.func @transform_2(%arg0: i32) -> (i32, i32) {
    %c0_i32 = arith.constant 0 : i32
    %c0_i32_0 = arith.constant 0 : i32
    %c0_i32_1 = arith.constant 0 : i32
    return %c0_i32, %c0_i32_0 : i32, i32
  }
  func.func @transform_3(%arg0: i32) -> (i32, i32, i32) {
    %c0_i32 = arith.constant 0 : i32
    %c0_i32_0 = arith.constant 0 : i32
    %c0_i32_1 = arith.constant 0 : i32
    return %arg0, %c0_i32, %c0_i32_0 : i32, i32, i32
  }
}

</mosaic_0001>

<llo_original>
// kernel: tpu_custom_call.1
$region0: #{tpu_custom_call.1}
  #allocation0 [shape = 'u32[]', space=smem, size = 0x4, offset = 0x4, fixed_abs, tag = 'smem constant byte address 0x4 - core index']
  #allocation1 [shape = 'u32[144,128]{1,0:T(1,128)}', space=vmem, size = 0x12000, scoped, tag = 'internal scratch']
  %s0 = inlined_call_operand.hbm [shape: bf16[2,8,96], index: 0, kind: input, shape index: {}]
  %s1 = inlined_call_operand.hbm [shape: bf16[96,2048], index: 1, kind: input, shape index: {}]
  %s2 = inlined_call_operand.hbm [shape: f32[1,2048], index: 2, kind: input, shape index: {}]
  %s3 = inlined_call_operand.hbm [shape: bf16[2,8,2048], index: 3, kind: output, shape index: {}]
  %s4 = sld [smem:[#allocation0]]
  $region57: #{tpu_custom_call.1} parent=0
    _
  %s6 = ssub.s32 1, %s4
  %s7 = scalar_select 0, %s6, %s4
  $region1: #{tpu_custom_call.1} parent=0
    #allocation2 [shape = 'u8[4096]{0}', space=vmem, size = 0x1000, scoped, tag = 'input window, operand 0']
    #allocation3 [shape = 's32[2]{0}', space=sflag, size = 0x8, scoped, tag = 'scoped memory for tpu_custom_call.1']
    #allocation4 [shape = 's32[2]{0}', space=sflag, size = 0x8, scoped, tag = 'scoped memory for tpu_custom_call.1']
    #allocation5 [shape = 'u8[393216]{0}', space=vmem, size = 0x60000, scoped, tag = 'input window, operand 1, single buffered']
    #allocation6 [shape = 's32[1]{0}', space=sflag, size = 0x4, scoped, tag = 'scoped memory for tpu_custom_call.1']
    #allocation7 [shape = 'u8[8192]{0}', space=vmem, size = 0x2000, scoped, tag = 'input window, operand 2, single buffered']
    #allocation8 [shape = 'u8[65536]{0}', space=vmem, size = 0x10000, scoped, tag = 'output window, operand 0']
    %8 = vsyncpa [#allocation3], 0
    %s9 = scalar_lea.sflag [#allocation3], 1
    %10 = vsyncpa %s9, 0
    %11 = vsyncpa [#allocation6], 0
    %12 = vsyncpa [#allocation4], 0
    %s13 = scalar_lea.sflag [#allocation4], 1
    %14 = vsyncpa %s13, 0
    loop: start=0, step=1, limit=4
    $region2: #{tpu_custom_call.1} parent=1 // loop_pre_header
      _
    $region3: #{tpu_custom_call.1} parent=1 // loop_header
      %s16 = sphi 0, %s20
      %p17 = scmp.ge.s32.totalorder %s16, 4
      %s26 = sphi 0, %s28
      %s29 = sphi 0, %s26
      %s30 = sphi 0, %s29
      %s46 = sphi 0, %s30
      %s50 = sphi 0, %s50
      %s52 = sphi 0, %s50
      %s53 = sphi 0, %s52
      %s67 = sphi 0, %s53
      %s71 = sphi 0, %s71
      %s73 = sphi 0, %s71
      %s74 = sphi 0, %s73
      %s88 = sphi 0, %s74
      %s94 = sphi 0, %s96
      %s97 = sphi 0, %s94
      %s98 = sphi 0, %s97
      %s114 = sphi 0, %s98
    $region4: #{tpu_custom_call.1} parent=1 // loop_header_branch
      %19 = sbr.rel (%p17) target = $region8
    $region5: #{tpu_custom_call.1} parent=1 // loop_body
      %s21 = ssub.s32 %s16, 1
      %s22 = ssub.s32 %s16, 2
      %s23 = sadd.s32 %s16, 1
      %s24 = ssub.s32 %s16, %s23
      %p25 = scmp.eq.s32.totalorder %s24, 0
      %s27 = sadd.s32 %s26, 1
      %s28 = scalar_select %p25, %s26, %s27
      %p31 = pneg %p25
      %p32 = scmp.eq.s32.totalorder %s16, 1
      %p33 = por %p31, %p32
      %p34 = scmp.ne.s32.totalorder %s26, %s29
      %p35 = scmp.eq.s32.totalorder %s16, 0
      %p36 = por %p34, %p35
      %p37 = scmp.ne.s32.totalorder %s26, %s29
      %p38 = scmp.eq.s32.totalorder %s21, 1
      %p39 = por %p37, %p38
      %p40 = scmp.ne.s32.totalorder %s29, %s30
      %p41 = scmp.eq.s32.totalorder %s21, 0
      %p42 = por %p40, %p41
      %p43 = scmp.ne.s32.totalorder %s29, %s30
      %p44 = scmp.eq.s32.totalorder %s22, 1
      %p45 = por %p43, %p44
      %p47 = scmp.ne.s32.totalorder %s30, %s46
      %p48 = scmp.eq.s32.totalorder %s22, 0
      %p49 = por %p47, %p48
      %s51 = sadd.s32 %s50, 1
      %p54 = scmp.eq.s32.totalorder %s16, 1
      %p55 = scmp.ne.s32.totalorder %s50, %s52
      %p56 = scmp.eq.s32.totalorder %s16, 0
      %p57 = por %p55, %p56
      %p58 = scmp.ne.s32.totalorder %s50, %s52
      %p59 = scmp.eq.s32.totalorder %s21, 1
      %p60 = por %p58, %p59
      %p61 = scmp.ne.s32.totalorder %s52, %s53
      %p62 = scmp.eq.s32.totalorder %s21, 0
      %p63 = por %p61, %p62
      %p64 = scmp.ne.s32.totalorder %s52, %s53
      %p65 = scmp.eq.s32.totalorder %s22, 1
      %p66 = por %p64, %p65
      %p68 = scmp.ne.s32.totalorder %s53, %s67
      %p69 = scmp.eq.s32.totalorder %s22, 0
      %p70 = por %p68, %p69
      %s72 = sadd.s32 %s71, 1
      %p75 = scmp.eq.s32.totalorder %s16, 1
      %p76 = scmp.ne.s32.totalorder %s71, %s73
      %p77 = scmp.eq.s32.totalorder %s16, 0
      %p78 = por %p76, %p77
      %p79 = scmp.ne.s32.totalorder %s71, %s73
      %p80 = scmp.eq.s32.totalorder %s21, 1
      %p81 = por %p79, %p80
      %p82 = scmp.ne.s32.totalorder %s73, %s74
      %p83 = scmp.eq.s32.totalorder %s21, 0
      %p84 = por %p82, %p83
      %p85 = scmp.ne.s32.totalorder %s73, %s74
      %p86 = scmp.eq.s32.totalorder %s22, 1
      %p87 = por %p85, %p86
      %p89 = scmp.ne.s32.totalorder %s74, %s88
      %p90 = scmp.eq.s32.totalorder %s22, 0
      %p91 = por %p89, %p90
      %s92 = ssub.s32 %s16, %s23
      %p93 = scmp.eq.s32.totalorder %s92, 0
      %s95 = sadd.s32 %s94, 1
      %s96 = scalar_select %p93, %s94, %s95
      %p99 = pneg %p93
      %p100 = scmp.eq.s32.totalorder %s16, 1
      %p101 = por %p99, %p100
      %p102 = scmp.ne.s32.totalorder %s94, %s97
      %p103 = scmp.eq.s32.totalorder %s16, 0
      %p104 = por %p102, %p103
      %p105 = scmp.ne.s32.totalorder %s94, %s97
      %p106 = scmp.eq.s32.totalorder %s21, 1
      %p107 = por %p105, %p106
      %p108 = scmp.ne.s32.totalorder %s97, %s98
      %p109 = scmp.eq.s32.totalorder %s21, 0
      %p110 = por %p108, %p109
      %p111 = scmp.ne.s32.totalorder %s97, %s98
      %p112 = scmp.eq.s32.totalorder %s22, 1
      %p113 = por %p111, %p112
      %p115 = scmp.ne.s32.totalorder %s98, %s114
      %p116 = scmp.eq.s32.totalorder %s22, 0
      %p117 = por %p115, %p116
      %p118 = scmp.le.s32.totalorder 1, %s16
      %p119 = scmp.lt.s32.totalorder %s16, 3
      %p120 = pnand %p118, %p119
      %p121 = pneg %p120
      // Predicated region
      $region9: #{tpu_custom_call.1} parent=5 // pred_check
        _
      $region10: #{tpu_custom_call.1} parent=5 // pred_check_branch
        %123 = sbr.rel (%p120) target = $region12
      $region11: #{tpu_custom_call.1} parent=5 // pred_region
        %s124 = ssub.s32 %s16, 1
        // Predicated region
        $region13: #{tpu_custom_call.1} parent=11 // pred_check
          %p125 = pneg %p63
        $region14: #{tpu_custom_call.1} parent=11 // pred_check_branch
          %127 = sbr.rel (%p125) target = $region16
        $region15: #{tpu_custom_call.1} parent=11 // pred_region
          %s129 = ssub.s32 12288, 12288
          %130 = vsyncadd [#allocation6], %s129
          %s131 = sshll.u32 [#allocation5], 4
          %s132 = int_to_ptr.vmem [resolvable:$true] %s131
          %137 = dma.hbm_to_vmem [thread:$0]  %s1, 12288, %s132, [#allocation6], 1024, 1024, 64
        $region16: #{tpu_custom_call.1} parent=11 // pred_fallthru
          _
        // Predicated region
        $region17: #{tpu_custom_call.1} parent=11 // pred_check
          %p138 = pneg %p84
        $region18: #{tpu_custom_call.1} parent=11 // pred_check_branch
          %140 = sbr.rel (%p138) target = $region20
        $region19: #{tpu_custom_call.1} parent=11 // pred_region
          %s142 = ssub.s32 256, 256
          %143 = vsyncadd [#allocation6], %s142
          %s145 = sshll.u32 [#allocation7], 4
          %s146 = int_to_ptr.vmem [resolvable:$true] %s145
          %148 = dma.hbm_to_vmem [thread:$0]  %s2, 256, %s146, [#allocation6]
        $region20: #{tpu_custom_call.1} parent=11 // pred_fallthru
          _
      $region12: #{tpu_custom_call.1} parent=5 // pred_fallthru
        _
      %p149 = scmp.lt.s32.totalorder %s16, 2
      // Predicated region
      $region21: #{tpu_custom_call.1} parent=5 // pred_check
        %p150 = pneg %p149
      $region22: #{tpu_custom_call.1} parent=5 // pred_check_branch
        %152 = sbr.rel (%p150) target = $region24
      $region23: #{tpu_custom_call.1} parent=5 // pred_region
        // Predicated region
        $region25: #{tpu_custom_call.1} parent=23 // pred_check
          %p153 = pneg %p36
        $region26: #{tpu_custom_call.1} parent=23 // pred_check_branch
          %155 = sbr.rel (%p153) target = $region28
        $region27: #{tpu_custom_call.1} parent=23 // pred_region
          %s156 = sand.u32 %s26, 1
          %s157 = scalar_lea.sflag [#allocation3], %s156
          %s158 = sand.u32 %s26, 1
          %s159 = smul.addr %s158, 4
          %s160 = scalar_lea.vmem [#allocation2], %s159
          %s162 = ssub.s32 64, 64
          %163 = vsyncadd %s157, %s162
          %s164 = smul.addr %s16, 64
          %s165 = scalar_lea.hbm %s0, %s164
          %s167 = sshll.u32 %s160, 4
          %s168 = int_to_ptr.vmem [resolvable:$true] %s167
          %170 = dma.hbm_to_vmem [thread:$0]  %s165, 64, %s168, %s157
        $region28: #{tpu_custom_call.1} parent=23 // pred_fallthru
          _
      $region24: #{tpu_custom_call.1} parent=5 // pred_fallthru
        _
      %p171 = scmp.le.s32.totalorder 1, %s16
      %p172 = scmp.lt.s32.totalorder %s16, 3
      %p173 = pnand %p171, %p172
      %p174 = pneg %p173
      // Predicated region
      $region29: #{tpu_custom_call.1} parent=5 // pred_check
        _
      $region30: #{tpu_custom_call.1} parent=5 // pred_check_branch
        %176 = sbr.rel (%p173) target = $region32
      $region31: #{tpu_custom_call.1} parent=5 // pred_region
        %s177 = ssub.s32 %s16, 1
        %s178 = sand.u32 %s29, 1
        %s179 = scalar_lea.sflag [#allocation3], %s178
        %s180 = sand.u32 %s29, 1
        %s181 = smul.addr %s180, 4
        %s182 = scalar_lea.vmem [#allocation2], %s181
        // Predicated region
        $region33: #{tpu_custom_call.1} parent=31 // pred_check
          %p183 = pneg %p42
        $region34: #{tpu_custom_call.1} parent=31 // pred_check_branch
          %185 = sbr.rel (%p183) target = $region36
        $region35: #{tpu_custom_call.1} parent=31 // pred_region
          %186 = dma.done %s179, 64
        $region36: #{tpu_custom_call.1} parent=31 // pred_fallthru
          _
        // Predicated region
        $region37: #{tpu_custom_call.1} parent=31 // pred_check
          %p187 = pneg %p63
        $region38: #{tpu_custom_call.1} parent=31 // pred_check_branch
          %189 = sbr.rel (%p187) target = $region40
        $region39: #{tpu_custom_call.1} parent=31 // pred_region
          %190 = dma.done [#allocation6], 12288
        $region40: #{tpu_custom_call.1} parent=31 // pred_fallthru
          _
        // Predicated region
        $region41: #{tpu_custom_call.1} parent=31 // pred_check
          %p191 = pneg %p84
        $region42: #{tpu_custom_call.1} parent=31 // pred_check_branch
          %193 = sbr.rel (%p191) target = $region44
        $region43: #{tpu_custom_call.1} parent=31 // pred_region
          %194 = dma.done [#allocation6], 256
        $region44: #{tpu_custom_call.1} parent=31 // pred_fallthru
          _
        %s195 = sand.u32 %s29, 1
        %s196 = scalar_lea.sflag [#allocation3], %s195
        %s197 = sand.u32 %s29, 1
        %s198 = smul.addr %s197, 4
        %s199 = scalar_lea.vmem [#allocation2], %s198
        %p200 = pneg %p42
        %p201 = pneg %p39
        %p202 = pneg %p63
        %p203 = pneg %p60
        %p204 = pneg %p84
        %p205 = pneg %p81
        %p206 = pneg %p110
        %p207 = pneg %p107
        %s208 = sand.u32 %s97, 1
        %s209 = scalar_lea.sflag [#allocation4], %s208
        %s210 = sand.u32 %s97, 1
        %s211 = smul.addr %s210, 64
        %s212 = scalar_lea.vmem [#allocation8], %s211
        %v214 = vld [vmem:[%s182] sm:$0xf]
        %v215 = vld [vmem:[#allocation5] sm:$0xff]
        %v216 = vld [vmem:[#allocation5 + $0x8] sm:$0xff]
        %v217 = vld [vmem:[#allocation5 + $0x10] sm:$0xff]
        %v218 = vld [vmem:[#allocation5 + $0x18] sm:$0xff]
        %v219 = vld [vmem:[#allocation5 + $0x20] sm:$0xff]
        %v220 = vld [vmem:[#allocation5 + $0x28] sm:$0xff]
        %v221 = vld [vmem:[#allocation5 + $0x30] sm:$0xff]
        %v222 = vld [vmem:[#allocation5 + $0x38] sm:$0xff]
        %v223 = vld [vmem:[#allocation5 + $0x40] sm:$0xff]
        %v224 = vld [vmem:[#allocation5 + $0x48] sm:$0xff]
        %v225 = vld [vmem:[#allocation5 + $0x50] sm:$0xff]
        %v226 = vld [vmem:[#allocation5 + $0x58] sm:$0xff]
        %v227 = vld [vmem:[#allocation5 + $0x60] sm:$0xff]
        %v228 = vld [vmem:[#allocation5 + $0x68] sm:$0xff]
        %v229 = vld [vmem:[#allocation5 + $0x70] sm:$0xff]
        %v230 = vld [vmem:[#allocation5 + $0x78] sm:$0xff]
        %v231 = vld [vmem:[#allocation5 + $0x80] sm:$0xff]
        %v232 = vld [vmem:[#allocation5 + $0x88] sm:$0xff]
        %v233 = vld [vmem:[#allocation5 + $0x90] sm:$0xff]
        %v234 = vld [vmem:[#allocation5 + $0x98] sm:$0xff]
        %v235 = vld [vmem:[#allocation5 + $0xa0] sm:$0xff]
        %v236 = vld [vmem:[#allocation5 + $0xa8] sm:$0xff]
        %v237 = vld [vmem:[#allocation5 + $0xb0] sm:$0xff]
        %v238 = vld [vmem:[#allocation5 + $0xb8] sm:$0xff]
        %v239 = vld [vmem:[#allocation5 + $0xc0] sm:$0xff]
        %v240 = vld [vmem:[#allocation5 + $0xc8] sm:$0xff]
        %v241 = vld [vmem:[#allocation5 + $0xd0] sm:$0xff]
        %v242 = vld [vmem:[#allocation5 + $0xd8] sm:$0xff]
        %v243 = vld [vmem:[#allocation5 + $0xe0] sm:$0xff]
        %v244 = vld [vmem:[#allocation5 + $0xe8] sm:$0xff]
        %v245 = vld [vmem:[#allocation5 + $0xf0] sm:$0xff]
        %v246 = vld [vmem:[#allocation5 + $0xf8] sm:$0xff]
        %v247 = vld [vmem:[#allocation5 + $0x100] sm:$0xff]
        %v248 = vld [vmem:[#allocation5 + $0x108] sm:$0xff]
        %v249 = vld [vmem:[#allocation5 + $0x110] sm:$0xff]
        %v250 = vld [vmem:[#allocation5 + $0x118] sm:$0xff]
        %v251 = vld [vmem:[#allocation5 + $0x120] sm:$0xff]
        %v252 = vld [vmem:[#allocation5 + $0x128] sm:$0xff]
        %v253 = vld [vmem:[#allocation5 + $0x130] sm:$0xff]
        %v254 = vld [vmem:[#allocation5 + $0x138] sm:$0xff]
        %v255 = vld [vmem:[#allocation5 + $0x140] sm:$0xff]
        %v256 = vld [vmem:[#allocation5 + $0x148] sm:$0xff]
        %v257 = vld [vmem:[#allocation5 + $0x150] sm:$0xff]
        %v258 = vld [vmem:[#allocation5 + $0x158] sm:$0xff]
        %v259 = vld [vmem:[#allocation5 + $0x160] sm:$0xff]
        %v260 = vld [vmem:[#allocation5 + $0x168] sm:$0xff]
        %v261 = vld [vmem:[#allocation5 + $0x170] sm:$0xff]
        %v262 = vld [vmem:[#allocation5 + $0x178] sm:$0xff]
        %v263 = vld [vmem:[#allocation5 + $0x180] sm:$0xff]
        %v264 = vld [vmem:[#allocation5 + $0x188] sm:$0xff]
        %v265 = vld [vmem:[#allocation5 + $0x190] sm:$0xff]
        %v266 = vld [vmem:[#allocation5 + $0x198] sm:$0xff]
        %v267 = vld [vmem:[#allocation5 + $0x1a0] sm:$0xff]
        %v268 = vld [vmem:[#allocation5 + $0x1a8] sm:$0xff]
        %v269 = vld [vmem:[#allocation5 + $0x1b0] sm:$0xff]
        %v270 = vld [vmem:[#allocation5 + $0x1b8] sm:$0xff]
        %v271 = vld [vmem:[#allocation5 + $0x1c0] sm:$0xff]
        %v272 = vld [vmem:[#allocation5 + $0x1c8] sm:$0xff]
        %v273 = vld [vmem:[#allocation5 + $0x1d0] sm:$0xff]
        %v274 = vld [vmem:[#allocation5 + $0x1d8] sm:$0xff]
        %v275 = vld [vmem:[#allocation5 + $0x1e0] sm:$0xff]
        %v276 = vld [vmem:[#allocation5 + $0x1e8] sm:$0xff]
        %v277 = vld [vmem:[#allocation5 + $0x1f0] sm:$0xff]
        %v278 = vld [vmem:[#allocation5 + $0x1f8] sm:$0xff]
        %v279 = vld [vmem:[#allocation5 + $0x200] sm:$0xff]
        %v280 = vld [vmem:[#allocation5 + $0x208] sm:$0xff]
        %v281 = vld [vmem:[#allocation5 + $0x210] sm:$0xff]
        %v282 = vld [vmem:[#allocation5 + $0x218] sm:$0xff]
        %v283 = vld [vmem:[#allocation5 + $0x220] sm:$0xff]
        %v284 = vld [vmem:[#allocation5 + $0x228] sm:$0xff]
        %v285 = vld [vmem:[#allocation5 + $0x230] sm:$0xff]
        %v286 = vld [vmem:[#allocation5 + $0x238] sm:$0xff]
        %v287 = vld [vmem:[#allocation5 + $0x240] sm:$0xff]
        %v288 = vld [vmem:[#allocation5 + $0x248] sm:$0xff]
        %v289 = vld [vmem:[#allocation5 + $0x250] sm:$0xff]
        %v290 = vld [vmem:[#allocation5 + $0x258] sm:$0xff]
        %v291 = vld [vmem:[#allocation5 + $0x260] sm:$0xff]
        %v292 = vld [vmem:[#allocation5 + $0x268] sm:$0xff]
        %v293 = vld [vmem:[#allocation5 + $0x270] sm:$0xff]
        %v294 = vld [vmem:[#allocation5 + $0x278] sm:$0xff]
        %v295 = vld [vmem:[#allocation5 + $0x280] sm:$0xff]
        %v296 = vld [vmem:[#allocation5 + $0x288] sm:$0xff]
        %v297 = vld [vmem:[#allocation5 + $0x290] sm:$0xff]
        %v298 = vld [vmem:[#allocation5 + $0x298] sm:$0xff]
        %v299 = vld [vmem:[#allocation5 + $0x2a0] sm:$0xff]
        %v300 = vld [vmem:[#allocation5 + $0x2a8] sm:$0xff]
        %v301 = vld [vmem:[#allocation5 + $0x2b0] sm:$0xff]
        %v302 = vld [vmem:[#allocation5 + $0x2b8] sm:$0xff]
        %v303 = vld [vmem:[#allocation5 + $0x2c0] sm:$0xff]
        %v304 = vld [vmem:[#allocation5 + $0x2c8] sm:$0xff]
        %v305 = vld [vmem:[#allocation5 + $0x2d0] sm:$0xff]
        %v306 = vld [vmem:[#allocation5 + $0x2d8] sm:$0xff]
        %v307 = vld [vmem:[#allocation5 + $0x2e0] sm:$0xff]
        %v308 = vld [vmem:[#allocation5 + $0x2e8] sm:$0xff]
        %v309 = vld [vmem:[#allocation5 + $0x2f0] sm:$0xff]
        %v310 = vld [vmem:[#allocation5 + $0x2f8] sm:$0xff]
        %v311 = vld [vmem:[#allocation7] sm:$0xff]
        %v312 = vld [vmem:[#allocation7 + $0x8] sm:$0xff]
        %v315 = vlaneseq
        %v316 = vshrl.u32 %v315, 7
        %v317 = vsub.s32 0, %v316
        %v318 = vrot.slane %v311, %v317
        %v319 = vlaneseq
        %v320 = vshrl.u32 %v319, 7
        %v321 = vsub.s32 1, %v320
        %v322 = vrot.slane %v311, %v321
        %v323 = vlaneseq
        %v324 = vshrl.u32 %v323, 7
        %v325 = vsub.s32 2, %v324
        %v326 = vrot.slane %v311, %v325
        %v327 = vlaneseq
        %v328 = vshrl.u32 %v327, 7
        %v329 = vsub.s32 3, %v328
        %v330 = vrot.slane %v311, %v329
        %v331 = vlaneseq
        %v332 = vshrl.u32 %v331, 7
        %v333 = vsub.s32 4, %v332
        %v334 = vrot.slane %v311, %v333
        %v335 = vlaneseq
        %v336 = vshrl.u32 %v335, 7
        %v337 = vsub.s32 5, %v336
        %v338 = vrot.slane %v311, %v337
        %v339 = vlaneseq
        %v340 = vshrl.u32 %v339, 7
        %v341 = vsub.s32 6, %v340
        %v342 = vrot.slane %v311, %v341
        %v343 = vlaneseq
        %v344 = vshrl.u32 %v343, 7
        %v345 = vsub.s32 7, %v344
        %v346 = vrot.slane %v311, %v345
        %v347 = vlaneseq
        %v348 = vshrl.u32 %v347, 7
        %v349 = vsub.s32 0, %v348
        %v350 = vrot.slane %v312, %v349
        %v351 = vlaneseq
        %v352 = vshrl.u32 %v351, 7
        %v353 = vsub.s32 1, %v352
        %v354 = vrot.slane %v312, %v353
        %v355 = vlaneseq
        %v356 = vshrl.u32 %v355, 7
        %v357 = vsub.s32 2, %v356
        %v358 = vrot.slane %v312, %v357
        %v359 = vlaneseq
        %v360 = vshrl.u32 %v359, 7
        %v361 = vsub.s32 3, %v360
        %v362 = vrot.slane %v312, %v361
        %v363 = vlaneseq
        %v364 = vshrl.u32 %v363, 7
        %v365 = vsub.s32 4, %v364
        %v366 = vrot.slane %v312, %v365
        %v367 = vlaneseq
        %v368 = vshrl.u32 %v367, 7
        %v369 = vsub.s32 5, %v368
        %v370 = vrot.slane %v312, %v369
        %v371 = vlaneseq
        %v372 = vshrl.u32 %v371, 7
        %v373 = vsub.s32 6, %v372
        %v374 = vrot.slane %v312, %v373
        %v375 = vlaneseq
        %v376 = vshrl.u32 %v375, 7
        %v377 = vsub.s32 7, %v376
        %v378 = vrot.slane %v312, %v377
        %v491 = vunpack.c.l.b16 %v215
        %v492 = vunpack.c.h.b16 %v215
        %v493 = vunpack.c.l.b16 %v216
        %v494 = vunpack.c.h.b16 %v216
        %v495 = vunpack.c.l.b16 %v217
        %v496 = vunpack.c.h.b16 %v217
        %v497 = vunpack.c.l.b16 %v218
        %v498 = vunpack.c.h.b16 %v218
        %v499 = vunpack.c.l.b16 %v219
        %v500 = vunpack.c.h.b16 %v219
        %v501 = vunpack.c.l.b16 %v220
        %v502 = vunpack.c.h.b16 %v220
        %v503 = vunpack.c.l.b16 %v221
        %v504 = vunpack.c.h.b16 %v221
        %v505 = vunpack.c.l.b16 %v222
        %v506 = vunpack.c.h.b16 %v222
        %v507 = vunpack.c.l.b16 %v223
        %v508 = vunpack.c.h.b16 %v223
        %v509 = vunpack.c.l.b16 %v224
        %v510 = vunpack.c.h.b16 %v224
        %v511 = vunpack.c.l.b16 %v225
        %v512 = vunpack.c.h.b16 %v225
        %v513 = vunpack.c.l.b16 %v226
        %v514 = vunpack.c.h.b16 %v226
        %v515 = vunpack.c.l.b16 %v227
        %v516 = vunpack.c.h.b16 %v227
        %v517 = vunpack.c.l.b16 %v228
        %v518 = vunpack.c.h.b16 %v228
        %v519 = vunpack.c.l.b16 %v229
        %v520 = vunpack.c.h.b16 %v229
        %v521 = vunpack.c.l.b16 %v230
        %v522 = vunpack.c.h.b16 %v230
        %v523 = vunpack.c.l.b16 %v231
        %v524 = vunpack.c.h.b16 %v231
        %v525 = vunpack.c.l.b16 %v232
        %v526 = vunpack.c.h.b16 %v232
        %v527 = vunpack.c.l.b16 %v233
        %v528 = vunpack.c.h.b16 %v233
        %v529 = vunpack.c.l.b16 %v234
        %v530 = vunpack.c.h.b16 %v234
        %v531 = vunpack.c.l.b16 %v235
        %v532 = vunpack.c.h.b16 %v235
        %v533 = vunpack.c.l.b16 %v236
        %v534 = vunpack.c.h.b16 %v236
        %v535 = vunpack.c.l.b16 %v237
        %v536 = vunpack.c.h.b16 %v237
        %v537 = vunpack.c.l.b16 %v238
        %v538 = vunpack.c.h.b16 %v238
        %v539 = vunpack.c.l.b16 %v239
        %v540 = vunpack.c.h.b16 %v239
        %v541 = vunpack.c.l.b16 %v240
        %v542 = vunpack.c.h.b16 %v240
        %v543 = vunpack.c.l.b16 %v241
        %v544 = vunpack.c.h.b16 %v241
        %v545 = vunpack.c.l.b16 %v242
        %v546 = vunpack.c.h.b16 %v242
        %v547 = vunpack.c.l.b16 %v243
        %v548 = vunpack.c.h.b16 %v243
        %v549 = vunpack.c.l.b16 %v244
        %v550 = vunpack.c.h.b16 %v244
        %v551 = vunpack.c.l.b16 %v245
        %v552 = vunpack.c.h.b16 %v245
        %v553 = vunpack.c.l.b16 %v246
        %v554 = vunpack.c.h.b16 %v246
        %v555 = vunpack.c.l.b16 %v247
        %v556 = vunpack.c.h.b16 %v247
        %v557 = vunpack.c.l.b16 %v248
        %v558 = vunpack.c.h.b16 %v248
        %v559 = vunpack.c.l.b16 %v249
        %v560 = vunpack.c.h.b16 %v249
        %v561 = vunpack.c.l.b16 %v250
        %v562 = vunpack.c.h.b16 %v250
        %v563 = vunpack.c.l.b16 %v251
        %v564 = vunpack.c.h.b16 %v251
        %v565 = vunpack.c.l.b16 %v252
        %v566 = vunpack.c.h.b16 %v252
        %v567 = vunpack.c.l.b16 %v253
        %v568 = vunpack.c.h.b16 %v253
        %v569 = vunpack.c.l.b16 %v254
        %v570 = vunpack.c.h.b16 %v254
        %v571 = vunpack.c.l.b16 %v255
        %v572 = vunpack.c.h.b16 %v255
        %v573 = vunpack.c.l.b16 %v256
        %v574 = vunpack.c.h.b16 %v256
        %v575 = vunpack.c.l.b16 %v257
        %v576 = vunpack.c.h.b16 %v257
        %v577 = vunpack.c.l.b16 %v258
        %v578 = vunpack.c.h.b16 %v258
        %v579 = vunpack.c.l.b16 %v259
        %v580 = vunpack.c.h.b16 %v259
        %v581 = vunpack.c.l.b16 %v260
        %v582 = vunpack.c.h.b16 %v260
        %v583 = vunpack.c.l.b16 %v261
        %v584 = vunpack.c.h.b16 %v261
        %v585 = vunpack.c.l.b16 %v262
        %v586 = vunpack.c.h.b16 %v262
        %v587 = vunpack.c.l.b16 %v263
        %v588 = vunpack.c.h.b16 %v263
        %v589 = vunpack.c.l.b16 %v264
        %v590 = vunpack.c.h.b16 %v264
        %v591 = vunpack.c.l.b16 %v265
        %v592 = vunpack.c.h.b16 %v265
        %v593 = vunpack.c.l.b16 %v266
        %v594 = vunpack.c.h.b16 %v266
        %v595 = vunpack.c.l.b16 %v267
        %v596 = vunpack.c.h.b16 %v267
        %v597 = vunpack.c.l.b16 %v268
        %v598 = vunpack.c.h.b16 %v268
        %v599 = vunpack.c.l.b16 %v269
        %v600 = vunpack.c.h.b16 %v269
        %v601 = vunpack.c.l.b16 %v270
        %v602 = vunpack.c.h.b16 %v270
        %v603 = vunpack.c.l.b16 %v271
        %v604 = vunpack.c.h.b16 %v271
        %v605 = vunpack.c.l.b16 %v272
        %v606 = vunpack.c.h.b16 %v272
        %v607 = vunpack.c.l.b16 %v273
        %v608 = vunpack.c.h.b16 %v273
        %v609 = vunpack.c.l.b16 %v274
        %v610 = vunpack.c.h.b16 %v274
        %v611 = vunpack.c.l.b16 %v275
        %v612 = vunpack.c.h.b16 %v275
        %v613 = vunpack.c.l.b16 %v276
        %v614 = vunpack.c.h.b16 %v276
        %v615 = vunpack.c.l.b16 %v277
        %v616 = vunpack.c.h.b16 %v277
        %v617 = vunpack.c.l.b16 %v278
        %v618 = vunpack.c.h.b16 %v278
        %v619 = vunpack.c.l.b16 %v279
        %v620 = vunpack.c.h.b16 %v279
        %v621 = vunpack.c.l.b16 %v280
        %v622 = vunpack.c.h.b16 %v280
        %v623 = vunpack.c.l.b16 %v281
        %v624 = vunpack.c.h.b16 %v281
        %v625 = vunpack.c.l.b16 %v282
        %v626 = vunpack.c.h.b16 %v282
        %v627 = vunpack.c.l.b16 %v283
        %v628 = vunpack.c.h.b16 %v283
        %v629 = vunpack.c.l.b16 %v284
        %v630 = vunpack.c.h.b16 %v284
        %v631 = vunpack.c.l.b16 %v285
        %v632 = vunpack.c.h.b16 %v285
        %v633 = vunpack.c.l.b16 %v286
        %v634 = vunpack.c.h.b16 %v286
        %v635 = vunpack.c.l.b16 %v287
        %v636 = vunpack.c.h.b16 %v287
        %v637 = vunpack.c.l.b16 %v288
        %v638 = vunpack.c.h.b16 %v288
        %v639 = vunpack.c.l.b16 %v289
        %v640 = vunpack.c.h.b16 %v289
        %v641 = vunpack.c.l.b16 %v290
        %v642 = vunpack.c.h.b16 %v290
        %v643 = vunpack.c.l.b16 %v291
        %v644 = vunpack.c.h.b16 %v291
        %v645 = vunpack.c.l.b16 %v292
        %v646 = vunpack.c.h.b16 %v292
        %v647 = vunpack.c.l.b16 %v293
        %v648 = vunpack.c.h.b16 %v293
        %v649 = vunpack.c.l.b16 %v294
        %v650 = vunpack.c.h.b16 %v294
        %v651 = vunpack.c.l.b16 %v295
        %v652 = vunpack.c.h.b16 %v295
        %v653 = vunpack.c.l.b16 %v296
        %v654 = vunpack.c.h.b16 %v296
        %v655 = vunpack.c.l.b16 %v297
        %v656 = vunpack.c.h.b16 %v297
        %v657 = vunpack.c.l.b16 %v298
        %v658 = vunpack.c.h.b16 %v298
        %v659 = vunpack.c.l.b16 %v299
        %v660 = vunpack.c.h.b16 %v299
        %v661 = vunpack.c.l.b16 %v300
        %v662 = vunpack.c.h.b16 %v300
        %v663 = vunpack.c.l.b16 %v301
        %v664 = vunpack.c.h.b16 %v301
        %v665 = vunpack.c.l.b16 %v302
        %v666 = vunpack.c.h.b16 %v302
        %v667 = vunpack.c.l.b16 %v303
        %v668 = vunpack.c.h.b16 %v303
        %v669 = vunpack.c.l.b16 %v304
        %v670 = vunpack.c.h.b16 %v304
        %v671 = vunpack.c.l.b16 %v305
        %v672 = vunpack.c.h.b16 %v305
        %v673 = vunpack.c.l.b16 %v306
        %v674 = vunpack.c.h.b16 %v306
        %v675 = vunpack.c.l.b16 %v307
        %v676 = vunpack.c.h.b16 %v307
        %v677 = vunpack.c.l.b16 %v308
        %v678 = vunpack.c.h.b16 %v308
        %v679 = vunpack.c.l.b16 %v309
        %v680 = vunpack.c.h.b16 %v309
        %v681 = vunpack.c.l.b16 %v310
        %v682 = vunpack.c.h.b16 %v310
        %v683 = vpack.c.b16 %v507, %v491
        %v684 = vpack.c.b16 %v508, %v492
        %v685 = vpack.c.b16 %v509, %v493
        %v686 = vpack.c.b16 %v510, %v494
        %v687 = vpack.c.b16 %v511, %v495
        %v688 = vpack.c.b16 %v512, %v496
        %v689 = vpack.c.b16 %v513, %v497
        %v690 = vpack.c.b16 %v514, %v498
        %v691 = vpack.c.b16 %v515, %v499
        %v692 = vpack.c.b16 %v516, %v500
        %v693 = vpack.c.b16 %v517, %v501
        %v694 = vpack.c.b16 %v518, %v502
        %v695 = vpack.c.b16 %v519, %v503
        %v696 = vpack.c.b16 %v520, %v504
        %v697 = vpack.c.b16 %v521, %v505
        %v698 = vpack.c.b16 %v522, %v506
        %v699 = vpack.c.b16 %v539, %v523
        %v700 = vpack.c.b16 %v540, %v524
        %v701 = vpack.c.b16 %v541, %v525
        %v702 = vpack.c.b16 %v542, %v526
        %v703 = vpack.c.b16 %v543, %v527
        %v704 = vpack.c.b16 %v544, %v528
        %v705 = vpack.c.b16 %v545, %v529
        %v706 = vpack.c.b16 %v546, %v530
        %v707 = vpack.c.b16 %v547, %v531
        %v708 = vpack.c.b16 %v548, %v532
        %v709 = vpack.c.b16 %v549, %v533
        %v710 = vpack.c.b16 %v550, %v534
        %v711 = vpack.c.b16 %v551, %v535
        %v712 = vpack.c.b16 %v552, %v536
        %v713 = vpack.c.b16 %v553, %v537
        %v714 = vpack.c.b16 %v554, %v538
        %v715 = vpack.c.b16 %v571, %v555
        %v716 = vpack.c.b16 %v572, %v556
        %v717 = vpack.c.b16 %v573, %v557
        %v718 = vpack.c.b16 %v574, %v558
        %v719 = vpack.c.b16 %v575, %v559
        %v720 = vpack.c.b16 %v576, %v560
        %v721 = vpack.c.b16 %v577, %v561
        %v722 = vpack.c.b16 %v578, %v562
        %v723 = vpack.c.b16 %v579, %v563
        %v724 = vpack.c.b16 %v580, %v564
        %v725 = vpack.c.b16 %v581, %v565
        %v726 = vpack.c.b16 %v582, %v566
        %v727 = vpack.c.b16 %v583, %v567
        %v728 = vpack.c.b16 %v584, %v568
        %v729 = vpack.c.b16 %v585, %v569
        %v730 = vpack.c.b16 %v586, %v570
        %v731 = vpack.c.b16 %v603, %v587
        %v732 = vpack.c.b16 %v604, %v588
        %v733 = vpack.c.b16 %v605, %v589
        %v734 = vpack.c.b16 %v606, %v590
        %v735 = vpack.c.b16 %v607, %v591
        %v736 = vpack.c.b16 %v608, %v592
        %v737 = vpack.c.b16 %v609, %v593
        %v738 = vpack.c.b16 %v610, %v594
        %v739 = vpack.c.b16 %v611, %v595
        %v740 = vpack.c.b16 %v612, %v596
        %v741 = vpack.c.b16 %v613, %v597
        %v742 = vpack.c.b16 %v614, %v598
        %v743 = vpack.c.b16 %v615, %v599
        %v744 = vpack.c.b16 %v616, %v600
        %v745 = vpack.c.b16 %v617, %v601
        %v746 = vpack.c.b16 %v618, %v602
        %v747 = vpack.c.b16 %v635, %v619
        %v748 = vpack.c.b16 %v636, %v620
        %v749 = vpack.c.b16 %v637, %v621
        %v750 = vpack.c.b16 %v638, %v622
        %v751 = vpack.c.b16 %v639, %v623
        %v752 = vpack.c.b16 %v640, %v624
        %v753 = vpack.c.b16 %v641, %v625
        %v754 = vpack.c.b16 %v642, %v626
        %v755 = vpack.c.b16 %v643, %v627
        %v756 = vpack.c.b16 %v644, %v628
        %v757 = vpack.c.b16 %v645, %v629
        %v758 = vpack.c.b16 %v646, %v630
        %v759 = vpack.c.b16 %v647, %v631
        %v760 = vpack.c.b16 %v648, %v632
        %v761 = vpack.c.b16 %v649, %v633
        %v762 = vpack.c.b16 %v650, %v634
        %v763 = vpack.c.b16 %v667, %v651
        %v764 = vpack.c.b16 %v668, %v652
        %v765 = vpack.c.b16 %v669, %v653
        %v766 = vpack.c.b16 %v670, %v654
        %v767 = vpack.c.b16 %v671, %v655
        %v768 = vpack.c.b16 %v672, %v656
        %v769 = vpack.c.b16 %v673, %v657
        %v770 = vpack.c.b16 %v674, %v658
        %v771 = vpack.c.b16 %v675, %v659
        %v772 = vpack.c.b16 %v676, %v660
        %v773 = vpack.c.b16 %v677, %v661
        %v774 = vpack.c.b16 %v678, %v662
        %v775 = vpack.c.b16 %v679, %v663
        %v776 = vpack.c.b16 %v680, %v664
        %v777 = vpack.c.b16 %v681, %v665
        %v778 = vpack.c.b16 %v682, %v666
        %vm875 = vcmask 785408
        %v877 = vsel %vm875, %v214, 0
        %879 = vmatprep.subr.bf16.mxu0 %v684
        %880 = vmatpush1.bf16.msra.mxu0 %v683
        %881 = vmatprep.subr.bf16.mxu0 %v700
        %882 = vmatpush1.bf16.msra.mxu0 %v699
        %883 = vmatprep.subr.bf16.mxu0 %v716
        %884 = vmatpush1.bf16.msra.mxu0 %v715
        %885 = vmatprep.subr.bf16.mxu0 %v732
        %886 = vmatpush1.bf16.msra.mxu0 %v731
        %887 = vmatprep.subr.bf16.mxu0 %v748
        %888 = vmatpush1.bf16.msra.mxu0 %v747
        %889 = vmatprep.subr.bf16.mxu0 %v764
        %890 = vmatpush1.bf16.msra.mxu0 %v763
        %891 = vmatprep.subr.bf16.mxu0 0
        %892 = vmatpush1.bf16.msra.mxu0 0
        %893 = vmatprep.subr.bf16.mxu0 0
        %894 = vmatpush1.bf16.msra.mxu0 0
        %895 = vmatprep.subr.bf16.mxu0 0
        %896 = vmatpush1.bf16.msra.mxu0 0
        %897 = vmatprep.subr.bf16.mxu0 0
        %898 = vmatpush1.bf16.msra.mxu0 0
        %899 = vmatprep.subr.bf16.mxu0 0
        %900 = vmatpush1.bf16.msra.mxu0 0
        %901 = vmatprep.subr.bf16.mxu0 0
        %902 = vmatpush1.bf16.msra.mxu0 0
        %903 = vmatprep.subr.bf16.mxu0 0
        %904 = vmatpush1.bf16.msra.mxu0 0
        %905 = vmatprep.subr.bf16.mxu0 0
        %906 = vmatpush1.bf16.msra.mxu0 0
        %907 = vmatprep.subr.bf16.mxu0 0
        %908 = vmatpush1.bf16.msra.mxu0 0
        %909 = vmatprep.subr.bf16.mxu0 0
        %910 = vmatpush1.bf16.msra.mxu0 0
        %911 = vmatprep.mubr.bf16.mxu0 0
        %912 = vmatmul.mubr.bf16.gmra.mrb[0].mxu0 %v877
        %v913 = vpop.f32.mrb[0].mxu0
        %v914 = vadd.f32 %v318, %v913
        %v915 = vpop.f32.mrb[0].mxu0
        %v916 = vadd.f32 %v322, %v915
        %v917 = vpop.f32.mrb[0].mxu0
        %v918 = vpop.f32.mrb[0].mxu0
        %919 = vdwg.mxu0
        %920 = vmatprep.subr.bf16.mxu0 %v686
        %921 = vmatpush1.bf16.msra.mxu0 %v685
        %922 = vmatprep.subr.bf16.mxu0 %v702
        %923 = vmatpush1.bf16.msra.mxu0 %v701
        %924 = vmatprep.subr.bf16.mxu0 %v718
        %925 = vmatpush1.bf16.msra.mxu0 %v717
        %926 = vmatprep.subr.bf16.mxu0 %v734
        %927 = vmatpush1.bf16.msra.mxu0 %v733
        %928 = vmatprep.subr.bf16.mxu0 %v750
        %929 = vmatpush1.bf16.msra.mxu0 %v749
        %930 = vmatprep.subr.bf16.mxu0 %v766
        %931 = vmatpush1.bf16.msra.mxu0 %v765
        %932 = vmatprep.subr.bf16.mxu0 0
        %933 = vmatpush1.bf16.msra.mxu0 0
        %934 = vmatprep.subr.bf16.mxu0 0
        %935 = vmatpush1.bf16.msra.mxu0 0
        %936 = vmatprep.subr.bf16.mxu0 0
        %937 = vmatpush1.bf16.msra.mxu0 0
        %938 = vmatprep.subr.bf16.mxu0 0
        %939 = vmatpush1.bf16.msra.mxu0 0
        %940 = vmatprep.subr.bf16.mxu0 0
        %941 = vmatpush1.bf16.msra.mxu0 0
        %942 = vmatprep.subr.bf16.mxu0 0
        %943 = vmatpush1.bf16.msra.mxu0 0
        %944 = vmatprep.subr.bf16.mxu0 0
        %945 = vmatpush1.bf16.msra.mxu0 0
        %946 = vmatprep.subr.bf16.mxu0 0
        %947 = vmatpush1.bf16.msra.mxu0 0
        %948 = vmatprep.subr.bf16.mxu0 0
        %949 = vmatpush1.bf16.msra.mxu0 0
        %950 = vmatprep.subr.bf16.mxu0 0
        %951 = vmatpush1.bf16.msra.mxu0 0
        %952 = vmatprep.mubr.bf16.mxu0 0
        %953 = vmatmul.mubr.bf16.gmra.mrb[0].mxu0 %v877
        %v954 = vpop.f32.mrb[0].mxu0
        %v955 = vadd.f32 %v326, %v954
        %v956 = vpop.f32.mrb[0].mxu0
        %v957 = vadd.f32 %v330, %v956
        %v958 = vpop.f32.mrb[0].mxu0
        %v959 = vpop.f32.mrb[0].mxu0
        %960 = vdwg.mxu0
        %961 = vmatprep.subr.bf16.mxu0 %v688
        %962 = vmatpush1.bf16.msra.mxu0 %v687
        %963 = vmatprep.subr.bf16.mxu0 %v704
        %964 = vmatpush1.bf16.msra.mxu0 %v703
        %965 = vmatprep.subr.bf16.mxu0 %v720
        %966 = vmatpush1.bf16.msra.mxu0 %v719
        %967 = vmatprep.subr.bf16.mxu0 %v736
        %968 = vmatpush1.bf16.msra.mxu0 %v735
        %969 = vmatprep.subr.bf16.mxu0 %v752
        %970 = vmatpush1.bf16.msra.mxu0 %v751
        %971 = vmatprep.subr.bf16.mxu0 %v768
        %972 = vmatpush1.bf16.msra.mxu0 %v767
        %973 = vmatprep.subr.bf16.mxu0 0
        %974 = vmatpush1.bf16.msra.mxu0 0
        %975 = vmatprep.subr.bf16.mxu0 0
        %976 = vmatpush1.bf16.msra.mxu0 0
        %977 = vmatprep.subr.bf16.mxu0 0
        %978 = vmatpush1.bf16.msra.mxu0 0
        %979 = vmatprep.subr.bf16.mxu0 0
        %980 = vmatpush1.bf16.msra.mxu0 0
        %981 = vmatprep.subr.bf16.mxu0 0
        %982 = vmatpush1.bf16.msra.mxu0 0
        %983 = vmatprep.subr.bf16.mxu0 0
        %984 = vmatpush1.bf16.msra.mxu0 0
        %985 = vmatprep.subr.bf16.mxu0 0
        %986 = vmatpush1.bf16.msra.mxu0 0
        %987 = vmatprep.subr.bf16.mxu0 0
        %988 = vmatpush1.bf16.msra.mxu0 0
        %989 = vmatprep.subr.bf16.mxu0 0
        %990 = vmatpush1.bf16.msra.mxu0 0
        %991 = vmatprep.subr.bf16.mxu0 0
        %992 = vmatpush1.bf16.msra.mxu0 0
        %993 = vmatprep.mubr.bf16.mxu0 0
        %994 = vmatmul.mubr.bf16.gmra.mrb[0].mxu0 %v877
        %v995 = vpop.f32.mrb[0].mxu0
        %v996 = vadd.f32 %v334, %v995
        %v997 = vpop.f32.mrb[0].mxu0
        %v998 = vadd.f32 %v338, %v997
        %v999 = vpop.f32.mrb[0].mxu0
        %v1000 = vpop.f32.mrb[0].mxu0
        %1001 = vdwg.mxu0
        %1002 = vmatprep.subr.bf16.mxu0 %v690
        %1003 = vmatpush1.bf16.msra.mxu0 %v689
        %1004 = vmatprep.subr.bf16.mxu0 %v706
        %1005 = vmatpush1.bf16.msra.mxu0 %v705
        %1006 = vmatprep.subr.bf16.mxu0 %v722
        %1007 = vmatpush1.bf16.msra.mxu0 %v721
        %1008 = vmatprep.subr.bf16.mxu0 %v738
        %1009 = vmatpush1.bf16.msra.mxu0 %v737
        %1010 = vmatprep.subr.bf16.mxu0 %v754
        %1011 = vmatpush1.bf16.msra.mxu0 %v753
        %1012 = vmatprep.subr.bf16.mxu0 %v770
        %1013 = vmatpush1.bf16.msra.mxu0 %v769
        %1014 = vmatprep.subr.bf16.mxu0 0
        %1015 = vmatpush1.bf16.msra.mxu0 0
        %1016 = vmatprep.subr.bf16.mxu0 0
        %1017 = vmatpush1.bf16.msra.mxu0 0
        %1018 = vmatprep.subr.bf16.mxu0 0
        %1019 = vmatpush1.bf16.msra.mxu0 0
        %1020 = vmatprep.subr.bf16.mxu0 0
        %1021 = vmatpush1.bf16.msra.mxu0 0
        %1022 = vmatprep.subr.bf16.mxu0 0
        %1023 = vmatpush1.bf16.msra.mxu0 0
        %1024 = vmatprep.subr.bf16.mxu0 0
        %1025 = vmatpush1.bf16.msra.mxu0 0
        %1026 = vmatprep.subr.bf16.mxu0 0
        %1027 = vmatpush1.bf16.msra.mxu0 0
        %1028 = vmatprep.subr.bf16.mxu0 0
        %1029 = vmatpush1.bf16.msra.mxu0 0
        %1030 = vmatprep.subr.bf16.mxu0 0
        %1031 = vmatpush1.bf16.msra.mxu0 0
        %1032 = vmatprep.subr.bf16.mxu0 0
        %1033 = vmatpush1.bf16.msra.mxu0 0
        %1034 = vmatprep.mubr.bf16.mxu0 0
        %1035 = vmatmul.mubr.bf16.gmra.mrb[0].mxu0 %v877
        %v1036 = vpop.f32.mrb[0].mxu0
        %v1037 = vadd.f32 %v342, %v1036
        %v1038 = vpop.f32.mrb[0].mxu0
        %v1039 = vadd.f32 %v346, %v1038
        %v1040 = vpop.f32.mrb[0].mxu0
        %v1041 = vpop.f32.mrb[0].mxu0
        %1042 = vdwg.mxu0
        %1043 = vmatprep.subr.bf16.mxu0 %v692
        %1044 = vmatpush1.bf16.msra.mxu0 %v691
        %1045 = vmatprep.subr.bf16.mxu0 %v708
        %1046 = vmatpush1.bf16.msra.mxu0 %v707
        %1047 = vmatprep.subr.bf16.mxu0 %v724
        %1048 = vmatpush1.bf16.msra.mxu0 %v723
        %1049 = vmatprep.subr.bf16.mxu0 %v740
        %1050 = vmatpush1.bf16.msra.mxu0 %v739
        %1051 = vmatprep.subr.bf16.mxu0 %v756
        %1052 = vmatpush1.bf16.msra.mxu0 %v755
        %1053 = vmatprep.subr.bf16.mxu0 %v772
        %1054 = vmatpush1.bf16.msra.mxu0 %v771
        %1055 = vmatprep.subr.bf16.mxu0 0
        %1056 = vmatpush1.bf16.msra.mxu0 0
        %1057 = vmatprep.subr.bf16.mxu0 0
        %1058 = vmatpush1.bf16.msra.mxu0 0
        %1059 = vmatprep.subr.bf16.mxu0 0
        %1060 = vmatpush1.bf16.msra.mxu0 0
        %1061 = vmatprep.subr.bf16.mxu0 0
        %1062 = vmatpush1.bf16.msra.mxu0 0
        %1063 = vmatprep.subr.bf16.mxu0 0
        %1064 = vmatpush1.bf16.msra.mxu0 0
        %1065 = vmatprep.subr.bf16.mxu0 0
        %1066 = vmatpush1.bf16.msra.mxu0 0
        %1067 = vmatprep.subr.bf16.mxu0 0
        %1068 = vmatpush1.bf16.msra.mxu0 0
        %1069 = vmatprep.subr.bf16.mxu0 0
        %1070 = vmatpush1.bf16.msra.mxu0 0
        %1071 = vmatprep.subr.bf16.mxu0 0
        %1072 = vmatpush1.bf16.msra.mxu0 0
        %1073 = vmatprep.subr.bf16.mxu0 0
        %1074 = vmatpush1.bf16.msra.mxu0 0
        %1075 = vmatprep.mubr.bf16.mxu0 0
        %1076 = vmatmul.mubr.bf16.gmra.mrb[0].mxu0 %v877
        %v1077 = vpop.f32.mrb[0].mxu0
        %v1078 = vadd.f32 %v350, %v1077
        %v1079 = vpop.f32.mrb[0].mxu0
        %v1080 = vadd.f32 %v354, %v1079
        %v1081 = vpop.f32.mrb[0].mxu0
        %v1082 = vpop.f32.mrb[0].mxu0
        %1083 = vdwg.mxu0
        %1084 = vmatprep.subr.bf16.mxu0 %v694
        %1085 = vmatpush1.bf16.msra.mxu0 %v693
        %1086 = vmatprep.subr.bf16.mxu0 %v710
        %1087 = vmatpush1.bf16.msra.mxu0 %v709
        %1088 = vmatprep.subr.bf16.mxu0 %v726
        %1089 = vmatpush1.bf16.msra.mxu0 %v725
        %1090 = vmatprep.subr.bf16.mxu0 %v742
        %1091 = vmatpush1.bf16.msra.mxu0 %v741
        %1092 = vmatprep.subr.bf16.mxu0 %v758
        %1093 = vmatpush1.bf16.msra.mxu0 %v757
        %1094 = vmatprep.subr.bf16.mxu0 %v774
        %1095 = vmatpush1.bf16.msra.mxu0 %v773
        %1096 = vmatprep.subr.bf16.mxu0 0
        %1097 = vmatpush1.bf16.msra.mxu0 0
        %1098 = vmatprep.subr.bf16.mxu0 0
        %1099 = vmatpush1.bf16.msra.mxu0 0
        %1100 = vmatprep.subr.bf16.mxu0 0
        %1101 = vmatpush1.bf16.msra.mxu0 0
        %1102 = vmatprep.subr.bf16.mxu0 0
        %1103 = vmatpush1.bf16.msra.mxu0 0
        %1104 = vmatprep.subr.bf16.mxu0 0
        %1105 = vmatpush1.bf16.msra.mxu0 0
        %1106 = vmatprep.subr.bf16.mxu0 0
        %1107 = vmatpush1.bf16.msra.mxu0 0
        %1108 = vmatprep.subr.bf16.mxu0 0
        %1109 = vmatpush1.bf16.msra.mxu0 0
        %1110 = vmatprep.subr.bf16.mxu0 0
        %1111 = vmatpush1.bf16.msra.mxu0 0
        %1112 = vmatprep.subr.bf16.mxu0 0
        %1113 = vmatpush1.bf16.msra.mxu0 0
        %1114 = vmatprep.subr.bf16.mxu0 0
        %1115 = vmatpush1.bf16.msra.mxu0 0
        %1116 = vmatprep.mubr.bf16.mxu0 0
        %1117 = vmatmul.mubr.bf16.gmra.mrb[0].mxu0 %v877
        %v1118 = vpop.f32.mrb[0].mxu0
        %v1119 = vadd.f32 %v358, %v1118
        %v1120 = vpop.f32.mrb[0].mxu0
        %v1121 = vadd.f32 %v362, %v1120
        %v1122 = vpop.f32.mrb[0].mxu0
        %v1123 = vpop.f32.mrb[0].mxu0
        %1124 = vdwg.mxu0
        %1125 = vmatprep.subr.bf16.mxu0 %v696
        %1126 = vmatpush1.bf16.msra.mxu0 %v695
        %1127 = vmatprep.subr.bf16.mxu0 %v712
        %1128 = vmatpush1.bf16.msra.mxu0 %v711
        %1129 = vmatprep.subr.bf16.mxu0 %v728
        %1130 = vmatpush1.bf16.msra.mxu0 %v727
        %1131 = vmatprep.subr.bf16.mxu0 %v744
        %1132 = vmatpush1.bf16.msra.mxu0 %v743
        %1133 = vmatprep.subr.bf16.mxu0 %v760
        %1134 = vmatpush1.bf16.msra.mxu0 %v759
        %1135 = vmatprep.subr.bf16.mxu0 %v776
        %1136 = vmatpush1.bf16.msra.mxu0 %v775
        %1137 = vmatprep.subr.bf16.mxu0 0
        %1138 = vmatpush1.bf16.msra.mxu0 0
        %1139 = vmatprep.subr.bf16.mxu0 0
        %1140 = vmatpush1.bf16.msra.mxu0 0
        %1141 = vmatprep.subr.bf16.mxu0 0
        %1142 = vmatpush1.bf16.msra.mxu0 0
        %1143 = vmatprep.subr.bf16.mxu0 0
        %1144 = vmatpush1.bf16.msra.mxu0 0
        %1145 = vmatprep.subr.bf16.mxu0 0
        %1146 = vmatpush1.bf16.msra.mxu0 0
        %1147 = vmatprep.subr.bf16.mxu0 0
        %1148 = vmatpush1.bf16.msra.mxu0 0
        %1149 = vmatprep.subr.bf16.mxu0 0
        %1150 = vmatpush1.bf16.msra.mxu0 0
        %1151 = vmatprep.subr.bf16.mxu0 0
        %1152 = vmatpush1.bf16.msra.mxu0 0
        %1153 = vmatprep.subr.bf16.mxu0 0
        %1154 = vmatpush1.bf16.msra.mxu0 0
        %1155 = vmatprep.subr.bf16.mxu0 0
        %1156 = vmatpush1.bf16.msra.mxu0 0
        %1157 = vmatprep.mubr.bf16.mxu0 0
        %1158 = vmatmul.mubr.bf16.gmra.mrb[0].mxu0 %v877
        %v1159 = vpop.f32.mrb[0].mxu0
        %v1160 = vadd.f32 %v366, %v1159
        %v1161 = vpop.f32.mrb[0].mxu0
        %v1162 = vadd.f32 %v370, %v1161
        %v1163 = vpop.f32.mrb[0].mxu0
        %v1164 = vpop.f32.mrb[0].mxu0
        %1165 = vdwg.mxu0
        %1166 = vmatprep.subr.bf16.mxu0 %v698
        %1167 = vmatpush1.bf16.msra.mxu0 %v697
        %1168 = vmatprep.subr.bf16.mxu0 %v714
        %1169 = vmatpush1.bf16.msra.mxu0 %v713
        %1170 = vmatprep.subr.bf16.mxu0 %v730
        %1171 = vmatpush1.bf16.msra.mxu0 %v729
        %1172 = vmatprep.subr.bf16.mxu0 %v746
        %1173 = vmatpush1.bf16.msra.mxu0 %v745
        %1174 = vmatprep.subr.bf16.mxu0 %v762
        %1175 = vmatpush1.bf16.msra.mxu0 %v761
        %1176 = vmatprep.subr.bf16.mxu0 %v778
        %1177 = vmatpush1.bf16.msra.mxu0 %v777
        %1178 = vmatprep.subr.bf16.mxu0 0
        %1179 = vmatpush1.bf16.msra.mxu0 0
        %1180 = vmatprep.subr.bf16.mxu0 0
        %1181 = vmatpush1.bf16.msra.mxu0 0
        %1182 = vmatprep.subr.bf16.mxu0 0
        %1183 = vmatpush1.bf16.msra.mxu0 0
        %1184 = vmatprep.subr.bf16.mxu0 0
        %1185 = vmatpush1.bf16.msra.mxu0 0
        %1186 = vmatprep.subr.bf16.mxu0 0
        %1187 = vmatpush1.bf16.msra.mxu0 0
        %1188 = vmatprep.subr.bf16.mxu0 0
        %1189 = vmatpush1.bf16.msra.mxu0 0
        %1190 = vmatprep.subr.bf16.mxu0 0
        %1191 = vmatpush1.bf16.msra.mxu0 0
        %1192 = vmatprep.subr.bf16.mxu0 0
        %1193 = vmatpush1.bf16.msra.mxu0 0
        %1194 = vmatprep.subr.bf16.mxu0 0
        %1195 = vmatpush1.bf16.msra.mxu0 0
        %1196 = vmatprep.subr.bf16.mxu0 0
        %1197 = vmatpush1.bf16.msra.mxu0 0
        %1198 = vmatprep.mubr.bf16.mxu0 0
        %1199 = vmatmul.mubr.bf16.gmra.mrb[0].mxu0 %v877
        %v1200 = vpop.f32.mrb[0].mxu0
        %v1201 = vadd.f32 %v374, %v1200
        %v1202 = vpop.f32.mrb[0].mxu0
        %v1203 = vadd.f32 %v378, %v1202
        %v1204 = vpop.f32.mrb[0].mxu0
        %v1205 = vpop.f32.mrb[0].mxu0
        %1206 = vdwg.mxu0
        %vm1207 = vcmp.ge.f32.partialorder %v914, 0.0
        %vm1208 = vcmp.ge.f32.partialorder %v916, 0.0
        %vm1209 = vcmp.ge.f32.partialorder %v955, 0.0
        %vm1210 = vcmp.ge.f32.partialorder %v957, 0.0
        %vm1211 = vcmp.ge.f32.partialorder %v996, 0.0
        %vm1212 = vcmp.ge.f32.partialorder %v998, 0.0
        %vm1213 = vcmp.ge.f32.partialorder %v1037, 0.0
        %vm1214 = vcmp.ge.f32.partialorder %v1039, 0.0
        %vm1215 = vcmp.ge.f32.partialorder %v1078, 0.0
        %vm1216 = vcmp.ge.f32.partialorder %v1080, 0.0
        %vm1217 = vcmp.ge.f32.partialorder %v1119, 0.0
        %vm1218 = vcmp.ge.f32.partialorder %v1121, 0.0
        %vm1219 = vcmp.ge.f32.partialorder %v1160, 0.0
        %vm1220 = vcmp.ge.f32.partialorder %v1162, 0.0
        %vm1221 = vcmp.ge.f32.partialorder %v1201, 0.0
        %vm1222 = vcmp.ge.f32.partialorder %v1203, 0.0
        %v1223 = vmul.f32 %v914, 0.01
        %v1224 = vmul.f32 %v916, 0.01
        %v1225 = vmul.f32 %v955, 0.01
        %v1226 = vmul.f32 %v957, 0.01
        %v1227 = vmul.f32 %v996, 0.01
        %v1228 = vmul.f32 %v998, 0.01
        %v1229 = vmul.f32 %v1037, 0.01
        %v1230 = vmul.f32 %v1039, 0.01
        %v1231 = vmul.f32 %v1078, 0.01
        %v1232 = vmul.f32 %v1080, 0.01
        %v1233 = vmul.f32 %v1119, 0.01
        %v1234 = vmul.f32 %v1121, 0.01
        %v1235 = vmul.f32 %v1160, 0.01
        %v1236 = vmul.f32 %v1162, 0.01
        %v1237 = vmul.f32 %v1201, 0.01
        %v1238 = vmul.f32 %v1203, 0.01
        %v1239 = vsel %vm1207, %v914, %v1223
        %v1240 = vsel %vm1208, %v916, %v1224
        %v1241 = vsel %vm1209, %v955, %v1225
        %v1242 = vsel %vm1210, %v957, %v1226
        %v1243 = vsel %vm1211, %v996, %v1227
        %v1244 = vsel %vm1212, %v998, %v1228
        %v1245 = vsel %vm1213, %v1037, %v1229
        %v1246 = vsel %vm1214, %v1039, %v1230
        %v1247 = vsel %vm1215, %v1078, %v1231
        %v1248 = vsel %vm1216, %v1080, %v1232
        %v1249 = vsel %vm1217, %v1119, %v1233
        %v1250 = vsel %vm1218, %v1121, %v1234
        %v1251 = vsel %vm1219, %v1160, %v1235
        %v1252 = vsel %vm1220, %v1162, %v1236
        %v1253 = vsel %vm1221, %v1201, %v1237
        %v1254 = vsel %vm1222, %v1203, %v1238
        %v1255 = vpack.c.bf16 %v1239, %v1239
        %v1256 = vpack.c.bf16 %v1240, %v1240
        %v1257 = vpack.c.bf16 %v1241, %v1241
        %v1258 = vpack.c.bf16 %v1242, %v1242
        %v1259 = vpack.c.bf16 %v1243, %v1243
        %v1260 = vpack.c.bf16 %v1244, %v1244
        %v1261 = vpack.c.bf16 %v1245, %v1245
        %v1262 = vpack.c.bf16 %v1246, %v1246
        %v1263 = vpack.c.bf16 %v1247, %v1247
        %v1264 = vpack.c.bf16 %v1248, %v1248
        %v1265 = vpack.c.bf16 %v1249, %v1249
        %v1266 = vpack.c.bf16 %v1250, %v1250
        %v1267 = vpack.c.bf16 %v1251, %v1251
        %v1268 = vpack.c.bf16 %v1252, %v1252
        %v1269 = vpack.c.bf16 %v1253, %v1253
        %v1270 = vpack.c.bf16 %v1254, %v1254
        %v1287 = vunpack.c.l.b16 %v1255
        %v1288 = vunpack.c.l.b16 %v1256
        %v1289 = vunpack.c.l.b16 %v1257
        %v1290 = vunpack.c.l.b16 %v1258
        %v1291 = vunpack.c.l.b16 %v1259
        %v1292 = vunpack.c.l.b16 %v1260
        %v1293 = vunpack.c.l.b16 %v1261
        %v1294 = vunpack.c.l.b16 %v1262
        %v1295 = vunpack.c.l.b16 %v1263
        %v1296 = vunpack.c.l.b16 %v1264
        %v1297 = vunpack.c.l.b16 %v1265
        %v1298 = vunpack.c.l.b16 %v1266
        %v1299 = vunpack.c.l.b16 %v1267
        %v1300 = vunpack.c.l.b16 %v1268
        %v1301 = vunpack.c.l.b16 %v1269
        %v1302 = vunpack.c.l.b16 %v1270
        %v1303 = vpack.c.b16 %v1288, %v1287
        %v1304 = vpack.c.b16 %v1290, %v1289
        %v1305 = vpack.c.b16 %v1292, %v1291
        %v1306 = vpack.c.b16 %v1294, %v1293
        %v1307 = vpack.c.b16 %v1296, %v1295
        %v1308 = vpack.c.b16 %v1298, %v1297
        %v1309 = vpack.c.b16 %v1300, %v1299
        %v1310 = vpack.c.b16 %v1302, %v1301
        %1319 = vst [vmem:[%s212] sm:$0xff] %v1303
        %1320 = vst [vmem:[%s212 + $0x8] sm:$0xff] %v1304
        %1321 = vst [vmem:[%s212 + $0x10] sm:$0xff] %v1305
        %1322 = vst [vmem:[%s212 + $0x18] sm:$0xff] %v1306
        %1323 = vst [vmem:[%s212 + $0x20] sm:$0xff] %v1307
        %1324 = vst [vmem:[%s212 + $0x28] sm:$0xff] %v1308
        %1325 = vst [vmem:[%s212 + $0x30] sm:$0xff] %v1309
        %1326 = vst [vmem:[%s212 + $0x38] sm:$0xff] %v1310
        %s1327 = sand.u32 %s97, 1
        %s1328 = scalar_lea.sflag [#allocation4], %s1327
        %s1329 = sand.u32 %s97, 1
        %s1330 = smul.addr %s1329, 64
        %s1331 = scalar_lea.vmem [#allocation8], %s1330
        // Predicated region
        $region45: #{tpu_custom_call.1} parent=31 // pred_check
          %p1332 = pneg %p107
        $region46: #{tpu_custom_call.1} parent=31 // pred_check_branch
          %1334 = sbr.rel (%p1332) target = $region48
        $region47: #{tpu_custom_call.1} parent=31 // pred_region
          %s1336 = ssub.s32 1024, 1024
          %1337 = vsyncadd %s1328, %s1336
          %s1338 = smul.addr %s21, 16
          %s1339 = smul.addr %s1338, 64
          %s1340 = scalar_lea.hbm %s3, %s1339
          %s1342 = sshll.u32 %s1331, 4
          %s1343 = int_to_ptr.vmem [resolvable:$true] %s1342
          %1345 = dma.vmem_to_hbm [thread:$0]  %s1343, 1024, %s1340, %s1328
        $region48: #{tpu_custom_call.1} parent=31 // pred_fallthru
          _
      $region32: #{tpu_custom_call.1} parent=5 // pred_fallthru
        _
      %p1346 = scmp.le.s32.totalorder 2, %s16
      // Predicated region
      $region49: #{tpu_custom_call.1} parent=5 // pred_check
        %p1347 = pneg %p1346
      $region50: #{tpu_custom_call.1} parent=5 // pred_check_branch
        %1349 = sbr.rel (%p1347) target = $region52
      $region51: #{tpu_custom_call.1} parent=5 // pred_region
        %s1350 = ssub.s32 %s16, 2
        // Predicated region
        $region53: #{tpu_custom_call.1} parent=51 // pred_check
          %p1351 = pneg %p113
        $region54: #{tpu_custom_call.1} parent=51 // pred_check_branch
          %1353 = sbr.rel (%p1351) target = $region56
        $region55: #{tpu_custom_call.1} parent=51 // pred_region
          %s1354 = sand.u32 %s98, 1
          %s1355 = scalar_lea.sflag [#allocation4], %s1354
          %s1356 = sand.u32 %s98, 1
          %s1357 = smul.addr %s1356, 64
          %s1358 = scalar_lea.vmem [#allocation8], %s1357
          %1359 = dma.done %s1355, 1024
        $region56: #{tpu_custom_call.1} parent=51 // pred_fallthru
          _
      $region52: #{tpu_custom_call.1} parent=5 // pred_fallthru
        _
    $region6: #{tpu_custom_call.1} parent=1 // loop_footer
      %s20 = sadd.s32 1, %s16
    $region7: #{tpu_custom_call.1} parent=1 // loop_footer_branch
      %15 = sbr.rel target = $region3
    $region8: #{tpu_custom_call.1} parent=1 // loop_exit
      _
    %1360 = vsyncpa [#allocation3], 1
    %s1361 = scalar_lea.sflag [#allocation3], 1
    %1362 = vsyncpa %s1361, 1
    %1363 = vsyncpa [#allocation6], 1
    %1364 = vsyncpa [#allocation4], 1
    %s1365 = scalar_lea.sflag [#allocation4], 1
    %1366 = vsyncpa %s1365, 1

</llo_original>
